<compile_context>
chip_gen: v5e
topology: v5e:2x2
jax: 0.10.0
libtpu: 0.0.40
codegen_flags: <defaults>
</compile_context>

<pallas_src>
import math
import functools

import jax
import jax.numpy as jnp
from jax.experimental import pallas as pl
from jax.experimental.pallas import tpu as pltpu


# --------------------------- generation-aware VMEM budget -----------------------------
def _vmem_limit_bytes():
    cap = None
    try:
        info = pltpu.get_tpu_info()
        cap = (getattr(info, "vmem_capacity_bytes", None)
               or getattr(info, "vmem_size_bytes", None))
    except Exception:
        cap = None
    if not cap:
        cap = 64 * 1024 * 1024          # conservative fallback (v7x-sized part)
    return int(cap) * 3 // 4            # ~96 MiB on v5e/v6e, ~48 MiB on v7x


_VMEM_LIMIT = _vmem_limit_bytes()
_NEG_INF = -1e30


# ----------------------- ALiBi slopes (static Python, passed via SMEM) ----------------
def get_slopes(n):
    def pow2_slopes(n):
        start = 2 ** (-2 ** (-(math.log2(n) - 3)))
        ratio = start
        return [start * ratio ** i for i in range(n)]

    if math.log2(n).is_integer():
        return pow2_slopes(n)
    closest = 2 ** math.floor(math.log2(n))
    return pow2_slopes(closest) + get_slopes(2 * closest)[0::2][: n - closest]


def _pick_tile(dim, pref, aligns=(256, 128, 8)):
    """Largest tile <= pref dividing dim, preferring MXU/lane-friendly alignments.
    Falls back to the full dim (always layout-legal)."""
    if dim <= pref:
        return dim
    for a in aligns:
        best = None
        t = a
        while t <= pref:
            if dim % t == 0:
                best = t
            t += a
        if best is not None:
            return best
    return dim


# ------------------------- fused tiled matmul (+bias/gelu/residual/LN) ----------------
def _make_matmul_kernel(has_bias, has_res, has_ln, has_ln_x, activation, transpose_rhs):
    def kernel(*refs):
        it = iter(refs)
        x_ref = next(it)
        w_ref = next(it)
        b_ref = next(it) if has_bias else None
        r_ref = next(it) if has_res else None
        g_ref = next(it) if has_ln else None
        beta_ref = next(it) if has_ln else None
        gx_ref = next(it) if has_ln_x else None
        bx_ref = next(it) if has_ln_x else None
        o_ref = next(it)
        acc_ref = next(it)

        k_step = pl.program_id(2)

        @pl.when(k_step == 0)
        def _():
            acc_ref[...] = jnp.zeros_like(acc_ref)

        x = x_ref[...]
        if has_ln_x:
            # prologue LayerNorm on the input rows (bk == K so the full row is present);
            # recomputed per j tile but only VPU work vs. the MXU matmul.
            xf = x.astype(jnp.float32)
            mean = jnp.mean(xf, axis=-1, keepdims=True)
            c = xf - mean
            var = jnp.mean(c * c, axis=-1, keepdims=True)
            x = c * jax.lax.rsqrt(var + 1e-5) * gx_ref[...] + bx_ref[...]

        # bf16 MXU inputs, f32 accumulation.
        xb = x.astype(jnp.bfloat16)
        wb = w_ref[...].astype(jnp.bfloat16)
        if transpose_rhs:
            # contract the last axis of both operands -> no emb.T materialization.
            # TODO(synk): verify via pl.lower_as_mlir that Mosaic keeps this on the MXU
            # transpose flags (no per-k-step XLU transpose of the weight tile).
            acc_ref[...] += jax.lax.dot_general(
                xb, wb, (((1,), (1,)), ((), ())),
                preferred_element_type=jnp.float32)
        else:
            acc_ref[...] += jnp.dot(xb, wb, preferred_element_type=jnp.float32)

        @pl.when(k_step == pl.num_programs(2) - 1)
        def _():
            y = acc_ref[...]
            if has_bias:
                y = y + b_ref[...]
            if activation == "gelu":
                # TODO(synk): torch F.gelu default is exact (erf); tanh-approx is used so
                # the activation fuses into the matmul epilogue (max abs dev ~1e-3).
                y = jax.nn.gelu(y, approximate=True)
            if has_res:
                y = y + r_ref[...].astype(jnp.float32)
            if has_ln:
                mean = jnp.mean(y, axis=-1, keepdims=True)
                c = y - mean
                var = jnp.mean(c * c, axis=-1, keepdims=True)
                y = c * jax.lax.rsqrt(var + 1e-5) * g_ref[...] + beta_ref[...]
            o_ref[...] = y.astype(o_ref.dtype)

    return kernel


def linear(x, w, b=None, *, residual=None, ln_gamma=None, ln_beta=None,
           ln_x_gamma=None, ln_x_beta=None, activation=None, transpose_rhs=False,
           out_dtype=jnp.float32, tm=256, tn=256, tk=512):
    """y = (LN_x?)(x) @ w (+ b) (-> gelu) (+ residual) (-> LayerNorm).
    x:(M,K); w:(K,N) or (N,K) if transpose_rhs."""
    M, K = x.shape
    if transpose_rhs:
        N, Kw = w.shape
    else:
        Kw, N = w.shape
    assert K == Kw
    has_bias = b is not None
    has_res = residual is not None
    has_ln = ln_gamma is not None
    has_ln_x = ln_x_gamma is not None

    x_bytes = jnp.dtype(x.dtype).itemsize
    w_bytes = jnp.dtype(w.dtype).itemsize
    out_bytes = jnp.dtype(out_dtype).itemsize

    # Lane-dim tiles first (128-aligned or full row, per the (8,128) rule):
    bk = K if has_ln_x else _pick_tile(K, tk, (128,))   # input-LN needs the full row
    bn = N if has_ln else _pick_tile(N, tn, (256, 128))  # output-LN needs the full row

    # Budget the row tile so the resident set (acc + double-buffered x/w/out/residual)
    # stays inside the per-generation VMEM limit (matters on v7x's 64 MiB with bn = N).
    budget = int(_VMEM_LIMIT * 0.7)
    fixed = 2 * bk * bn * w_bytes + 6 * bn * 4 + 2 * bk * 4
    per_row = (2 * bk * x_bytes + 2 * bn * out_bytes + bn * 4
               + (2 * bn * 4 if has_res else 0))
    bm_pref = max(8, min(tm, (budget - fixed) // max(per_row, 1)))
    bm = _pick_tile(M, bm_pref, (256, 128, 8))

    grid = (M // bm, N // bn, K // bk)

    in_specs = [pl.BlockSpec((bm, bk), lambda i, j, k: (i, k))]
    if transpose_rhs:
        in_specs.append(pl.BlockSpec((bn, bk), lambda i, j, k: (j, k)))
    else:
        in_specs.append(pl.BlockSpec((bk, bn), lambda i, j, k: (k, j)))
    args = [x, w]
    if has_bias:
        in_specs.append(pl.BlockSpec((1, bn), lambda i, j, k: (0, j)))
        args.append(b.reshape(1, N))
    if has_res:
        in_specs.append(pl.BlockSpec((bm, bn), lambda i, j, k: (i, j)))
        args.append(residual)
    if has_ln:
        in_specs.append(pl.BlockSpec((1, bn), lambda i, j, k: (0, j)))
        in_specs.append(pl.BlockSpec((1, bn), lambda i, j, k: (0, j)))
        args += [ln_gamma.reshape(1, N), ln_beta.reshape(1, N)]
    if has_ln_x:
        in_specs.append(pl.BlockSpec((1, bk), lambda i, j, k: (0, k)))
        in_specs.append(pl.BlockSpec((1, bk), lambda i, j, k: (0, k)))
        args += [ln_x_gamma.reshape(1, K), ln_x_beta.reshape(1, K)]

    # TODO(synk): consider pipeline_mode=pl.Buffered(3) on the weight BlockSpec for the
    # clearly mem-bound calls (logits / small-M decode) once verified on this toolchain.
    cost = pl.CostEstimate(
        flops=2 * M * N * K,
        transcendentals=(M * N if activation == "gelu" else 0),
        bytes_accessed=M * K * x_bytes + K * N * w_bytes + M * N * out_bytes)

    kernel = _make_matmul_kernel(has_bias, has_res, has_ln, has_ln_x,
                                 activation, transpose_rhs)
    return pl.pallas_call(
        kernel,
        out_shape=jax.ShapeDtypeStruct((M, N), out_dtype),
        grid=grid,
        in_specs=in_specs,
        out_specs=pl.BlockSpec((bm, bn), lambda i, j, k: (i, j)),
        scratch_shapes=[pltpu.VMEM((bm, bn), jnp.float32)],
        compiler_params=pltpu.CompilerParams(
            dimension_semantics=("parallel", "parallel", "arbitrary"),
            vmem_limit_bytes=_VMEM_LIMIT),
        cost_estimate=cost,
    )(*args)


# --------------------- flash-style multi-head ALiBi attention kernel ------------------
def _attention_kernel(slopes_ref, q_ref, k_ref, v_ref, o_ref,
                      m_sc, l_sc, acc_sc, *, scale, bq, bkv):
    h = pl.program_id(1)
    qi = pl.program_id(2)
    ki = pl.program_id(3)
    n_kv = pl.num_programs(3)

    @pl.when(ki == 0)
    def _():
        m_sc[...] = jnp.full_like(m_sc, _NEG_INF)
        l_sc[...] = jnp.zeros_like(l_sc)
        acc_sc[...] = jnp.zeros_like(acc_sc)

    q_start = qi * bq
    k_start = ki * bkv

    # Skip kv tiles that are entirely above the causal diagonal for this q tile.
    @pl.when(k_start <= q_start + bq - 1)
    def _():
        slope = slopes_ref[h]
        # q.k^T without an explicit K transpose: contract last axes of both (bf16 MXU).
        s = jax.lax.dot_general(
            q_ref[...], k_ref[...], (((1,), (1,)), ((), ())),
            preferred_element_type=jnp.float32) * scale
        row = q_start + jax.lax.broadcasted_iota(jnp.int32, (bq, bkv), 0)
        col = k_start + jax.lax.broadcasted_iota(jnp.int32, (bq, bkv), 1)
        # ALiBi bias per the reference model: slope * key index; causal -> large negative.
        s = s + jnp.where(col <= row, slope * col.astype(jnp.float32), _NEG_INF)

        m_prev = m_sc[...]
        m_new = jnp.maximum(m_prev, jnp.max(s, axis=-1, keepdims=True))
        alpha = jnp.exp(m_prev - m_new)
        p = jnp.exp(s - m_new)
        l_sc[...] = alpha * l_sc[...] + jnp.sum(p, axis=-1, keepdims=True)
        acc_sc[...] = alpha * acc_sc[...] + jnp.dot(
            p.astype(jnp.bfloat16), v_ref[...], preferred_element_type=jnp.float32)
        m_sc[...] = m_new

    @pl.when(ki == n_kv - 1)
    def _():
        o_ref[...] = (acc_sc[...] * pl.reciprocal(l_sc[...], approx=True)
                      ).astype(o_ref.dtype)


def attention(qkv5, slopes_arr, *, tq=256, tkv=256):
    """qkv5: (3, B, H, S, head_dim) bf16, head-major.  Flash-tiled online softmax with
    grid (B, H, q_tiles, kv_tiles); per-head windows only (no (S,S) or (S,3E) residency)."""
    _, B, H, S, hd = qkv5.shape
    bq = _pick_tile(S, tq, (128, 8))
    bkv = _pick_tile(S, tkv, (128, 8))
    scale = 1.0 / math.sqrt(hd)
    grid = (B, H, S // bq, S // bkv)

    kernel = functools.partial(_attention_kernel, scale=scale, bq=bq, bkv=bkv)
    cost = pl.CostEstimate(
        flops=4 * B * H * S * S * hd,
        transcendentals=B * H * S * S,
        bytes_accessed=(3 + 1) * B * H * S * hd * 2)

    return pl.pallas_call(
        kernel,
        out_shape=jax.ShapeDtypeStruct((B, H, S, hd), jnp.bfloat16),
        grid=grid,
        in_specs=[
            pl.BlockSpec(memory_space=pltpu.MemorySpace.SMEM),            # slopes (H,)
            pl.BlockSpec((None, None, None, bq, hd),
                         lambda b, h, qi, ki: (0, b, h, qi, 0)),           # Q tile
            pl.BlockSpec((None, None, None, bkv, hd),
                         lambda b, h, qi, ki: (1, b, h, ki, 0)),           # K tile
            pl.BlockSpec((None, None, None, bkv, hd),
                         lambda b, h, qi, ki: (2, b, h, ki, 0)),           # V tile
        ],
        out_specs=pl.BlockSpec((None, None, bq, hd),
                               lambda b, h, qi, ki: (b, h, qi, 0)),
        scratch_shapes=[pltpu.VMEM((bq, 1), jnp.float32),                  # m
                        pltpu.VMEM((bq, 1), jnp.float32),                  # l
                        pltpu.VMEM((bq, hd), jnp.float32)],                # acc
        compiler_params=pltpu.CompilerParams(
            dimension_semantics=("parallel", "parallel", "parallel", "arbitrary"),
            vmem_limit_bytes=_VMEM_LIMIT),
        cost_estimate=cost,
    )(slopes_arr, qkv5, qkv5, qkv5)


# ------------------------------- Model (JAX glue + kernels) ---------------------------
def decoder_block(x2d, p, *, batch, seq, n_heads, d_model, slopes_arr):
    hd = d_model // n_heads
    # 1) fused QKV projection (bf16 activation output -> half the HBM traffic)
    qkv = linear(x2d, p["c_attn_w"], p["c_attn_b"], out_dtype=jnp.bfloat16)
    # split heads to head-major layout for lane-legal per-head BlockSpec windows.
    # TODO(synk): when head_dim % 128 == 0 this XLA transpose can be removed by writing
    # the QKV matmul output directly into (3,B,H,S,hd) blocks (lane-windowed out spec).
    qkv5 = qkv.reshape(batch, seq, 3, n_heads, hd).transpose(2, 0, 3, 1, 4)
    # 2) flash-tiled ALiBi attention, grid (B, H, q_tiles, kv_tiles)
    a = attention(qkv5, slopes_arr)                              # (B,H,S,hd) bf16
    a2d = a.transpose(0, 2, 1, 3).reshape(batch * seq, d_model)  # combine heads
    # 3) output projection fused with residual-add + LayerNorm1 (dropout == identity)
    x2d = linear(a2d, p["c_proj_w"], p["c_proj_b"], residual=x2d,
                 ln_gamma=p["ln1_g"], ln_beta=p["ln1_b"])
    # 4) FFN up-projection fused with GELU (bf16 hidden activation)
    h = linear(x2d, p["lin1_w"], p["lin1_b"], activation="gelu", out_dtype=jnp.bfloat16)
    # 5) FFN down-projection fused with residual-add + LayerNorm2
    x2d = linear(h, p["lin2_w"], p["lin2_b"], residual=x2d,
                 ln_gamma=p["ln2_g"], ln_beta=p["ln2_b"])
    return x2d


def alibi_transformer_forward(params, tokens, *, n_heads):
    B, S = tokens.shape
    emb = params["embedding"]                       # (V, E), f32
    V, E = emb.shape
    slopes_arr = jnp.asarray(get_slopes(n_heads), dtype=jnp.float32)
    # TODO(synk): token-id gather has no clean rectangular-BlockSpec Pallas form;
    # kept as a single XLA gather.
    h2d = jnp.take(emb, tokens, axis=0).reshape(B * S, E)
    for lp in params["layers"]:
        h2d = decoder_block(h2d, lp, batch=B, seq=S, n_heads=n_heads,
                            d_model=E, slopes_arr=slopes_arr)
    # TODO(synk): `Norm` class is undefined in the source; assumed LayerNorm semantics.
    # Final Norm is fused as a prologue into the tied-embedding logits matmul
    # (NT contraction on emb's feature axis: no emb.T copy, no extra LN round trip).
    logits = linear(h2d, emb, None, transpose_rhs=True,
                    ln_x_gamma=params["norm_g"], ln_x_beta=params["norm_b"])
    return logits.reshape(B, S, V)


# ------------------------------- Parameter init ---------------------------------------
def init_params(key, n_vocab, d_model, n_layers, n_heads, proj_forward):
    keys = jax.random.split(key, 1 + n_layers)
    params = {
        "embedding": 0.02 * jax.random.normal(keys[0], (n_vocab, d_model), jnp.float32),
        "norm_g": jnp.ones((d_model,), jnp.float32),
        "norm_b": jnp.zeros((d_model,), jnp.float32),
        "layers": [],
    }
    for i in range(n_layers):
        lk = jax.random.split(keys[1 + i], 4)
        params["layers"].append(dict(
            # matmul weights stored bf16 (MXU inputs); biases/LN params stay f32.
            c_attn_w=(0.02 * jax.random.normal(lk[0], (d_model, 3 * d_model))).astype(jnp.bfloat16),
            c_attn_b=jnp.zeros((3 * d_model,), jnp.float32),
            c_proj_w=(0.02 * jax.random.normal(lk[1], (d_model, d_model))).astype(jnp.bfloat16),
            c_proj_b=jnp.zeros((d_model,), jnp.float32),
            lin1_w=(0.02 * jax.random.normal(lk[2], (d_model, proj_forward))).astype(jnp.bfloat16),
            lin1_b=jnp.zeros((proj_forward,), jnp.float32),
            lin2_w=(0.02 * jax.random.normal(lk[3], (proj_forward, d_model))).astype(jnp.bfloat16),
            lin2_b=jnp.zeros((d_model,), jnp.float32),
            ln1_g=jnp.ones((d_model,), jnp.float32),
            ln1_b=jnp.zeros((d_model,), jnp.float32),
            ln2_g=jnp.ones((d_model,), jnp.float32),
            ln2_b=jnp.zeros((d_model,), jnp.float32),
        ))
    return params


# ------------------------------------ Main ---------------------------------------------
if __name__ == "__main__":
    n_vocab, d_model = 64, 32                      # embed_dim == d_model (tied proj)
    n_layers, n_heads = 2, 4
    max_sequence, proj_forward = 16, 64
    batch, seq_len = 2, 8                          # seq_len <= max_sequence; in-kernel
    # mask generation at seq_len is identical to slicing the precomputed buffer.

    key = jax.random.PRNGKey(0)
    pkey, tkey = jax.random.split(key)
    params = init_params(pkey, n_vocab, d_model, n_layers, n_heads, proj_forward)
    tokens = jax.random.randint(tkey, (batch, seq_len), 0, n_vocab, dtype=jnp.int32)

    fwd = jax.jit(functools.partial(alibi_transformer_forward, n_heads=n_heads))
    logits = fwd(params, tokens)
    jax.block_until_ready(logits)
    assert logits.shape == (batch, seq_len, n_vocab)
    assert bool(jnp.all(jnp.isfinite(logits)))
    print("KERNEL_OK")
</pallas_src>

<mosaic_0001>
module attributes {stable_mosaic.version = 11 : i64} {
  func.func @kernel(%arg0: i32, %arg1: i32, %arg2: i32, %arg3: memref<16x32xf32, #tpu.memory_space<vmem>>, %arg4: memref<32x96xbf16, #tpu.memory_space<vmem>>, %arg5: memref<1x96xf32, #tpu.memory_space<vmem>>, %arg6: memref<16x96xbf16, #tpu.memory_space<vmem>>, %arg7: memref<16x96xf32, #tpu.memory_space<vmem>>) attributes {dimension_semantics = [#tpu.dimension_semantics<parallel>, #tpu.dimension_semantics<parallel>, #tpu.dimension_semantics<arbitrary>], iteration_bounds = array<i64: 1, 1, 1>, scalar_prefetch = 0 : i64, scratch_operands = 1 : i64, tpu.core_type = #tpu.core_type<tc>, window_params = [{transform_indices = @transform_0, window_bounds = array<i64: 16, 32>}, {transform_indices = @transform_1, window_bounds = array<i64: 32, 96>}, {transform_indices = @transform_2, window_bounds = array<i64: 1, 96>}, {transform_indices = @transform_3, window_bounds = array<i64: 16, 96>}]} {
    %c0_i32 = arith.constant 0 : i32
    %0 = arith.cmpi eq, %arg2, %c0_i32 : i32
    %1 = arith.extui %0 : i1 to i32
    %c0_i32_0 = arith.constant 0 : i32
    %2 = arith.cmpi ne, %1, %c0_i32_0 : i32
    scf.if %2 {
      %cst_10 = arith.constant 0.000000e+00 : f32
      %13 = vector.broadcast %cst_10 : f32 to vector<16x96xf32>
      %c0_11 = arith.constant 0 : index
      %c0_12 = arith.constant 0 : index
      %14 = vector.load %arg7[%c0_11, %c0_12] : memref<16x96xf32, #tpu.memory_space<vmem>>, vector<16x96xf32>
      tpu.vector_store %arg7[%c0_11, %c0_12], %13 {strides = array<i32>} : memref<16x96xf32, #tpu.memory_space<vmem>>, vector<16x96xf32>,
    } else {
    }
    %c0 = arith.constant 0 : index
    %c0_1 = arith.constant 0 : index
    %3 = vector.load %arg3[%c0, %c0_1] : memref<16x32xf32, #tpu.memory_space<vmem>>, vector<16x32xf32>
    %4 = arith.truncf %3 : vector<16x32xf32> to vector<16x32xbf16>
    %c0_2 = arith.constant 0 : index
    %c0_3 = arith.constant 0 : index
    %5 = vector.load %arg4[%c0_2, %c0_3] : memref<32x96xbf16, #tpu.memory_space<vmem>>, vector<32x96xbf16>
    %c0_4 = arith.constant 0 : index
    %c0_5 = arith.constant 0 : index
    %6 = vector.load %arg7[%c0_4, %c0_5] : memref<16x96xf32, #tpu.memory_space<vmem>>, vector<16x96xf32>
    %cst = arith.constant dense<0.000000e+00> : vector<16x96xf32>
    %7 = tpu.matmul %4, %5, %cst {dimension_numbers = #tpu.dot_dimension_numbers<[1], [0], [0], [1], [0, 0, 1, 1], [], []>} : vector<16x32xbf16>, vector<32x96xbf16>, vector<16x96xf32> -> vector<16x96xf32>
    %8 = arith.addf %6, %7 : vector<16x96xf32>
    %c0_6 = arith.constant 0 : index
    %c0_7 = arith.constant 0 : index
    %9 = vector.load %arg7[%c0_6, %c0_7] : memref<16x96xf32, #tpu.memory_space<vmem>>, vector<16x96xf32>
    tpu.vector_store %arg7[%c0_6, %c0_7], %8 {strides = array<i32>} : memref<16x96xf32, #tpu.memory_space<vmem>>, vector<16x96xf32>,
    %c0_i32_8 = arith.constant 0 : i32
    %10 = arith.cmpi eq, %arg2, %c0_i32_8 : i32
    %11 = arith.extui %10 : i1 to i32
    %c0_i32_9 = arith.constant 0 : i32
    %12 = arith.cmpi ne, %11, %c0_i32_9 : i32
    scf.if %12 {
      %c0_10 = arith.constant 0 : index
      %c0_11 = arith.constant 0 : index
      %13 = vector.load %arg7[%c0_10, %c0_11] : memref<16x96xf32, #tpu.memory_space<vmem>>, vector<16x96xf32>
      %c0_12 = arith.constant 0 : index
      %c0_13 = arith.constant 0 : index
      %14 = vector.load %arg5[%c0_12, %c0_13] : memref<1x96xf32, #tpu.memory_space<vmem>>, vector<1x96xf32>
      %15 = vector.broadcast %14 : vector<1x96xf32> to vector<16x96xf32>
      %16 = arith.addf %13, %15 : vector<16x96xf32>
      %17 = arith.truncf %16 : vector<16x96xf32> to vector<16x96xbf16>
      %c0_14 = arith.constant 0 : index
      %c0_15 = arith.constant 0 : index
      %18 = vector.load %arg6[%c0_14, %c0_15] : memref<16x96xbf16, #tpu.memory_space<vmem>>, vector<16x96xbf16>
      tpu.vector_store %arg6[%c0_14, %c0_15], %17 {strides = array<i32>} : memref<16x96xbf16, #tpu.memory_space<vmem>>, vector<16x96xbf16>,
    } else {
    }
    return
  }
  func.func @transform_0(%arg0: i32, %arg1: i32, %arg2: i32) -> (i32, i32) {
    %c0_i32 = arith.constant 0 : i32
    return %arg0, %arg2 : i32, i32
  }
  func.func @transform_1(%arg0: i32, %arg1: i32, %arg2: i32) -> (i32, i32) {
    %c0_i32 = arith.constant 0 : i32
    return %arg2, %arg1 : i32, i32
  }
  func.func @transform_2(%arg0: i32, %arg1: i32, %arg2: i32) -> (i32, i32) {
    %c0_i32 = arith.constant 0 : i32
    %c0_i32_0 = arith.constant 0 : i32
    return %c0_i32, %arg1 : i32, i32
  }
  func.func @transform_3(%arg0: i32, %arg1: i32, %arg2: i32) -> (i32, i32) {
    %c0_i32 = arith.constant 0 : i32
    return %arg0, %arg1 : i32, i32
  }
}

module attributes {stable_mosaic.version = 11 : i64} {
  func.func @_attention_kernel(%arg0: i32, %arg1: i32, %arg2: i32, %arg3: i32, %arg4: memref<4xf32, #tpu.memory_space<smem>>, %arg5: memref<1x1x1x8x8xbf16, #tpu.memory_space<vmem>>, %arg6: memref<1x1x1x8x8xbf16, #tpu.memory_space<vmem>>, %arg7: memref<1x1x1x8x8xbf16, #tpu.memory_space<vmem>>, %arg8: memref<1x1x8x8xbf16, #tpu.memory_space<vmem>>, %arg9: memref<8x1xf32, #tpu.memory_space<vmem>>, %arg10: memref<8x1xf32, #tpu.memory_space<vmem>>, %arg11: memref<8x8xf32, #tpu.memory_space<vmem>>) attributes {dimension_semantics = [#tpu.dimension_semantics<parallel>, #tpu.dimension_semantics<parallel>, #tpu.dimension_semantics<parallel>, #tpu.dimension_semantics<arbitrary>], iteration_bounds = array<i64: 2, 4, 1, 1>, scalar_prefetch = 0 : i64, scratch_operands = 3 : i64, tpu.core_type = #tpu.core_type<tc>, window_params = [{transform_indices = @transform_0, window_bounds = array<i64: 4>}, {transform_indices = @transform_1, window_bounds = array<i64: 1, 1, 1, 8, 8>}, {transform_indices = @transform_2, window_bounds = array<i64: 1, 1, 1, 8, 8>}, {transform_indices = @transform_3, window_bounds = array<i64: 1, 1, 1, 8, 8>}, {transform_indices = @transform_4, window_bounds = array<i64: 1, 1, 8, 8>}]} {
    %c0_i32 = arith.constant 0 : i32
    %0 = arith.cmpi eq, %arg3, %c0_i32 : i32
    %1 = arith.extui %0 : i1 to i32
    %c0_i32_0 = arith.constant 0 : i32
    %2 = arith.cmpi ne, %1, %c0_i32_0 : i32
    scf.if %2 {
      %cst = arith.constant -1.000000e+30 : f32
      %13 = vector.broadcast %cst : f32 to vector<8x1xf32>
      %c0 = arith.constant 0 : index
      %c0_6 = arith.constant 0 : index
      %14 = vector.load %arg9[%c0, %c0_6] : memref<8x1xf32, #tpu.memory_space<vmem>>, vector<8x1xf32>
      tpu.vector_store %arg9[%c0, %c0_6], %13 {strides = array<i32>} : memref<8x1xf32, #tpu.memory_space<vmem>>, vector<8x1xf32>,
      %cst_7 = arith.constant 0.000000e+00 : f32
      %15 = vector.broadcast %cst_7 : f32 to vector<8x1xf32>
      %c0_8 = arith.constant 0 : index
      %c0_9 = arith.constant 0 : index
      %16 = vector.load %arg10[%c0_8, %c0_9] : memref<8x1xf32, #tpu.memory_space<vmem>>, vector<8x1xf32>
      tpu.vector_store %arg10[%c0_8, %c0_9], %15 {strides = array<i32>} : memref<8x1xf32, #tpu.memory_space<vmem>>, vector<8x1xf32>,
      %cst_10 = arith.constant 0.000000e+00 : f32
      %17 = vector.broadcast %cst_10 : f32 to vector<8x8xf32>
      %c0_11 = arith.constant 0 : index
      %c0_12 = arith.constant 0 : index
      %18 = vector.load %arg11[%c0_11, %c0_12] : memref<8x8xf32, #tpu.memory_space<vmem>>, vector<8x8xf32>
      tpu.vector_store %arg11[%c0_11, %c0_12], %17 {strides = array<i32>} : memref<8x8xf32, #tpu.memory_space<vmem>>, vector<8x8xf32>,
    } else {
    }
    %c8_i32 = arith.constant 8 : i32
    %3 = arith.muli %arg2, %c8_i32 : i32
    %c8_i32_1 = arith.constant 8 : i32
    %4 = arith.muli %arg3, %c8_i32_1 : i32
    %c8_i32_2 = arith.constant 8 : i32
    %5 = arith.addi %3, %c8_i32_2 : i32
    %c1_i32 = arith.constant 1 : i32
    %6 = arith.subi %5, %c1_i32 : i32
    %7 = arith.cmpi sle, %4, %6 : i32
    %8 = arith.extui %7 : i1 to i32
    %c0_i32_3 = arith.constant 0 : i32
    %9 = arith.cmpi ne, %8, %c0_i32_3 : i32
    scf.if %9 {
      %13 = arith.index_cast %arg1 : i32 to index
      %14 = memref.load %arg4[%13] : memref<4xf32, #tpu.memory_space<smem>>
      %c0 = arith.constant 0 : index
      %c0_6 = arith.constant 0 : index
      %c0_7 = arith.constant 0 : index
      %c0_8 = arith.constant 0 : index
      %c0_9 = arith.constant 0 : index
      %15 = vector.load %arg5[%c0, %c0_6, %c0_7, %c0_8, %c0_9] : memref<1x1x1x8x8xbf16, #tpu.memory_space<vmem>>, vector<1x1x1x8x8xbf16>
      %16 = vector.shape_cast %15 : vector<1x1x1x8x8xbf16> to vector<8x8xbf16>
      %c0_10 = arith.constant 0 : index
      %c0_11 = arith.constant 0 : index
      %c0_12 = arith.constant 0 : index
      %c0_13 = arith.constant 0 : index
      %c0_14 = arith.constant 0 : index
      %17 = vector.load %arg6[%c0_10, %c0_11, %c0_12, %c0_13, %c0_14] : memref<1x1x1x8x8xbf16, #tpu.memory_space<vmem>>, vector<1x1x1x8x8xbf16>
      %18 = vector.shape_cast %17 : vector<1x1x1x8x8xbf16> to vector<8x8xbf16>
      %cst = arith.constant dense<0.000000e+00> : vector<8x8xf32>
      %19 = tpu.matmul %16, %18, %cst {dimension_numbers = #tpu.dot_dimension_numbers<[1], [1], [0], [0], [0, 0, 1, 0], [], []>} : vector<8x8xbf16>, vector<8x8xbf16>, vector<8x8xf32> -> vector<8x8xf32>
      %cst_15 = arith.constant 0.353553385 : f32
      %20 = vector.broadcast %cst_15 : f32 to vector<8x8xf32>
      %21 = arith.mulf %19, %20 : vector<8x8xf32>
      %22 = tpu.iota {dimensions = array<i32: 0>} : vector<8x8xi32>
      %23 = vector.broadcast %3 : i32 to vector<8x8xi32>
      %24 = arith.addi %23, %22 : vector<8x8xi32>
      %25 = tpu.iota {dimensions = array<i32: 1>} : vector<8x8xi32>
      %26 = vector.broadcast %4 : i32 to vector<8x8xi32>
      %27 = arith.addi %26, %25 : vector<8x8xi32>
      %28 = arith.cmpi sle, %27, %24 : vector<8x8xi32>
      %29 = arith.sitofp %27 : vector<8x8xi32> to vector<8x8xf32>
      %30 = vector.broadcast %14 : f32 to vector<8x8xf32>
      %31 = arith.mulf %30, %29 : vector<8x8xf32>
      %cst_16 = arith.constant -1.000000e+30 : f32
      %32 = vector.broadcast %cst_16 : f32 to vector<8x8xf32>
      %33 = arith.select %28, %31, %32 : vector<8x8xi1>, vector<8x8xf32>
      %34 = arith.addf %21, %33 : vector<8x8xf32>
      %c0_17 = arith.constant 0 : index
      %c0_18 = arith.constant 0 : index
      %35 = vector.load %arg9[%c0_17, %c0_18] : memref<8x1xf32, #tpu.memory_space<vmem>>, vector<8x1xf32>
      %cst_19 = arith.constant dense<0xFF800000> : vector<8xf32>
      %36 = vector.multi_reduction <maximumf>, %34, %cst_19 [1] : vector<8x8xf32> to vector<8xf32>
      %37 = vector.shape_cast %36 : vector<8xf32> to vector<8x1xf32>
      %38 = arith.maximumf %35, %37 : vector<8x1xf32>
      %39 = arith.subf %35, %38 : vector<8x1xf32>
      %40 = math.exp %39 : vector<8x1xf32>
      %41 = vector.broadcast %38 : vector<8x1xf32> to vector<8x8xf32>
      %42 = arith.subf %34, %41 : vector<8x8xf32>
      %43 = math.exp %42 : vector<8x8xf32>
      %c0_20 = arith.constant 0 : index
      %c0_21 = arith.constant 0 : index
      %44 = vector.load %arg10[%c0_20, %c0_21] : memref<8x1xf32, #tpu.memory_space<vmem>>, vector<8x1xf32>
      %45 = arith.mulf %40, %44 : vector<8x1xf32>
      %cst_22 = arith.constant dense<0.000000e+00> : vector<8xf32>
      %46 = vector.multi_reduction <add>, %43, %cst_22 [1] : vector<8x8xf32> to vector<8xf32>
      %47 = vector.shape_cast %46 : vector<8xf32> to vector<8x1xf32>
      %48 = arith.addf %45, %47 : vector<8x1xf32>
      %c0_23 = arith.constant 0 : index
      %c0_24 = arith.constant 0 : index
      %49 = vector.load %arg10[%c0_23, %c0_24] : memref<8x1xf32, #tpu.memory_space<vmem>>, vector<8x1xf32>
      tpu.vector_store %arg10[%c0_23, %c0_24], %48 {strides = array<i32>} : memref<8x1xf32, #tpu.memory_space<vmem>>, vector<8x1xf32>,
      %c0_25 = arith.constant 0 : index
      %c0_26 = arith.constant 0 : index
      %50 = vector.load %arg11[%c0_25, %c0_26] : memref<8x8xf32, #tpu.memory_space<vmem>>, vector<8x8xf32>
      %51 = vector.broadcast %40 : vector<8x1xf32> to vector<8x8xf32>
      %52 = arith.mulf %51, %50 : vector<8x8xf32>
      %53 = arith.truncf %43 : vector<8x8xf32> to vector<8x8xbf16>
      %c0_27 = arith.constant 0 : index
      %c0_28 = arith.constant 0 : index
      %c0_29 = arith.constant 0 : index
      %c0_30 = arith.constant 0 : index
      %c0_31 = arith.constant 0 : index
      %54 = vector.load %arg7[%c0_27, %c0_28, %c0_29, %c0_30, %c0_31] : memref<1x1x1x8x8xbf16, #tpu.memory_space<vmem>>, vector<1x1x1x8x8xbf16>
      %55 = vector.shape_cast %54 : vector<1x1x1x8x8xbf16> to vector<8x8xbf16>
      %cst_32 = arith.constant dense<0.000000e+00> : vector<8x8xf32>
      %56 = tpu.matmul %53, %55, %cst_32 {dimension_numbers = #tpu.dot_dimension_numbers<[1], [0], [0], [1], [0, 0, 1, 1], [], []>} : vector<8x8xbf16>, vector<8x8xbf16>, vector<8x8xf32> -> vector<8x8xf32>
      %57 = arith.addf %52, %56 : vector<8x8xf32>
      %c0_33 = arith.constant 0 : index
      %c0_34 = arith.constant 0 : index
      %58 = vector.load %arg11[%c0_33, %c0_34] : memref<8x8xf32, #tpu.memory_space<vmem>>, vector<8x8xf32>
      tpu.vector_store %arg11[%c0_33, %c0_34], %57 {strides = array<i32>} : memref<8x8xf32, #tpu.memory_space<vmem>>, vector<8x8xf32>,
      %c0_35 = arith.constant 0 : index
      %c0_36 = arith.constant 0 : index
      %59 = vector.load %arg9[%c0_35, %c0_36] : memref<8x1xf32, #tpu.memory_space<vmem>>, vector<8x1xf32>
      tpu.vector_store %arg9[%c0_35, %c0_36], %38 {strides = array<i32>} : memref<8x1xf32, #tpu.memory_space<vmem>>, vector<8x1xf32>,
    } else {
    }
    %c0_i32_4 = arith.constant 0 : i32
    %10 = arith.cmpi eq, %arg3, %c0_i32_4 : i32
    %11 = arith.extui %10 : i1 to i32
    %c0_i32_5 = arith.constant 0 : i32
    %12 = arith.cmpi ne, %11, %c0_i32_5 : i32
    scf.if %12 {
      %c0 = arith.constant 0 : index
      %c0_6 = arith.constant 0 : index
      %13 = vector.load %arg11[%c0, %c0_6] : memref<8x8xf32, #tpu.memory_space<vmem>>, vector<8x8xf32>
      %c0_7 = arith.constant 0 : index
      %c0_8 = arith.constant 0 : index
      %14 = vector.load %arg10[%c0_7, %c0_8] : memref<8x1xf32, #tpu.memory_space<vmem>>, vector<8x1xf32>
      %15 = tpu.reciprocal %14 {approx = true} : vector<8x1xf32> -> vector<8x1xf32>
      %16 = vector.broadcast %15 : vector<8x1xf32> to vector<8x8xf32>
      %17 = arith.mulf %13, %16 : vector<8x8xf32>
      %18 = arith.truncf %17 : vector<8x8xf32> to vector<8x8xbf16>
      %c0_9 = arith.constant 0 : index
      %c0_10 = arith.constant 0 : index
      %c0_11 = arith.constant 0 : index
      %c0_12 = arith.constant 0 : index
      %19 = vector.load %arg8[%c0_9, %c0_10, %c0_11, %c0_12] : memref<1x1x8x8xbf16, #tpu.memory_space<vmem>>, vector<1x1x8x8xbf16>
      %20 = vector.shape_cast %19 : vector<1x1x8x8xbf16> to vector<8x8xbf16>
      %21 = vector.shape_cast %18 : vector<8x8xbf16> to vector<1x1x8x8xbf16>
      tpu.vector_store %arg8[%c0_9, %c0_10, %c0_11, %c0_12], %21 {strides = array<i32>} : memref<1x1x8x8xbf16, #tpu.memory_space<vmem>>, vector<1x1x8x8xbf16>,
    } else {
    }
    return
  }
  func.func @transform_0(%arg0: i32, %arg1: i32, %arg2: i32, %arg3: i32) -> i32 {
    %c0_i32 = arith.constant 0 : i32
    %c0_i32_0 = arith.constant 0 : i32
    return %c0_i32 : i32
  }
  func.func @transform_1(%arg0: i32, %arg1: i32, %arg2: i32, %arg3: i32) -> (i32, i32, i32, i32, i32) {
    %c0_i32 = arith.constant 0 : i32
    %c0_i32_0 = arith.constant 0 : i32
    %c0_i32_1 = arith.constant 0 : i32
    return %c0_i32, %arg0, %arg1, %arg2, %c0_i32_0 : i32, i32, i32, i32, i32
  }
  func.func @transform_2(%arg0: i32, %arg1: i32, %arg2: i32, %arg3: i32) -> (i32, i32, i32, i32, i32) {
    %c1_i32 = arith.constant 1 : i32
    %c0_i32 = arith.constant 0 : i32
    %c0_i32_0 = arith.constant 0 : i32
    return %c1_i32, %arg0, %arg1, %arg3, %c0_i32 : i32, i32, i32, i32, i32
  }
  func.func @transform_3(%arg0: i32, %arg1: i32, %arg2: i32, %arg3: i32) -> (i32, i32, i32, i32, i32) {
    %c2_i32 = arith.constant 2 : i32
    %c0_i32 = arith.constant 0 : i32
    %c0_i32_0 = arith.constant 0 : i32
    return %c2_i32, %arg0, %arg1, %arg3, %c0_i32 : i32, i32, i32, i32, i32
  }
  func.func @transform_4(%arg0: i32, %arg1: i32, %arg2: i32, %arg3: i32) -> (i32, i32, i32, i32) {
    %c0_i32 = arith.constant 0 : i32
    %c0_i32_0 = arith.constant 0 : i32
    return %arg0, %arg1, %arg2, %c0_i32 : i32, i32, i32, i32
  }
}

module attributes {stable_mosaic.version = 11 : i64} {
  func.func @kernel(%arg0: i32, %arg1: i32, %arg2: i32, %arg3: memref<16x32xbf16, #tpu.memory_space<vmem>>, %arg4: memref<32x32xbf16, #tpu.memory_space<vmem>>, %arg5: memref<1x32xf32, #tpu.memory_space<vmem>>, %arg6: memref<16x32xf32, #tpu.memory_space<vmem>>, %arg7: memref<1x32xf32, #tpu.memory_space<vmem>>, %arg8: memref<1x32xf32, #tpu.memory_space<vmem>>, %arg9: memref<16x32xf32, #tpu.memory_space<vmem>>, %arg10: memref<16x32xf32, #tpu.memory_space<vmem>>) attributes {dimension_semantics = [#tpu.dimension_semantics<parallel>, #tpu.dimension_semantics<parallel>, #tpu.dimension_semantics<arbitrary>], iteration_bounds = array<i64: 1, 1, 1>, scalar_prefetch = 0 : i64, scratch_operands = 1 : i64, tpu.core_type = #tpu.core_type<tc>, window_params = [{transform_indices = @transform_0, window_bounds = array<i64: 16, 32>}, {transform_indices = @transform_1, window_bounds = array<i64: 32, 32>}, {transform_indices = @transform_2, window_bounds = array<i64: 1, 32>}, {transform_indices = @transform_3, window_bounds = array<i64: 16, 32>}, {transform_indices = @transform_4, window_bounds = array<i64: 1, 32>}, {transform_indices = @transform_5, window_bounds = array<i64: 1, 32>}, {transform_indices = @transform_6, window_bounds = array<i64: 16, 32>}]} {
    %c0_i32 = arith.constant 0 : i32
    %0 = arith.cmpi eq, %arg2, %c0_i32 : i32
    %1 = arith.extui %0 : i1 to i32
    %c0_i32_0 = arith.constant 0 : i32
    %2 = arith.cmpi ne, %1, %c0_i32_0 : i32
    scf.if %2 {
      %cst_10 = arith.constant 0.000000e+00 : f32
      %12 = vector.broadcast %cst_10 : f32 to vector<16x32xf32>
      %c0_11 = arith.constant 0 : index
      %c0_12 = arith.constant 0 : index
      %13 = vector.load %arg10[%c0_11, %c0_12] : memref<16x32xf32, #tpu.memory_space<vmem>>, vector<16x32xf32>
      tpu.vector_store %arg10[%c0_11, %c0_12], %12 {strides = array<i32>} : memref<16x32xf32, #tpu.memory_space<vmem>>, vector<16x32xf32>,
    } else {
    }
    %c0 = arith.constant 0 : index
    %c0_1 = arith.constant 0 : index
    %3 = vector.load %arg3[%c0, %c0_1] : memref<16x32xbf16, #tpu.memory_space<vmem>>, vector<16x32xbf16>
    %c0_2 = arith.constant 0 : index
    %c0_3 = arith.constant 0 : index
    %4 = vector.load %arg4[%c0_2, %c0_3] : memref<32x32xbf16, #tpu.memory_space<vmem>>, vector<32x32xbf16>
    %c0_4 = arith.constant 0 : index
    %c0_5 = arith.constant 0 : index
    %5 = vector.load %arg10[%c0_4, %c0_5] : memref<16x32xf32, #tpu.memory_space<vmem>>, vector<16x32xf32>
    %cst = arith.constant dense<0.000000e+00> : vector<16x32xf32>
    %6 = tpu.matmul %3, %4, %cst {dimension_numbers = #tpu.dot_dimension_numbers<[1], [0], [0], [1], [0, 0, 1, 1], [], []>} : vector<16x32xbf16>, vector<32x32xbf16>, vector<16x32xf32> -> vector<16x32xf32>
    %7 = arith.addf %5, %6 : vector<16x32xf32>
    %c0_6 = arith.constant 0 : index
    %c0_7 = arith.constant 0 : index
    %8 = vector.load %arg10[%c0_6, %c0_7] : memref<16x32xf32, #tpu.memory_space<vmem>>, vector<16x32xf32>
    tpu.vector_store %arg10[%c0_6, %c0_7], %7 {strides = array<i32>} : memref<16x32xf32, #tpu.memory_space<vmem>>, vector<16x32xf32>,
    %c0_i32_8 = arith.constant 0 : i32
    %9 = arith.cmpi eq, %arg2, %c0_i32_8 : i32
    %10 = arith.extui %9 : i1 to i32
    %c0_i32_9 = arith.constant 0 : i32
    %11 = arith.cmpi ne, %10, %c0_i32_9 : i32
    scf.if %11 {
      %c0_10 = arith.constant 0 : index
      %c0_11 = arith.constant 0 : index
      %12 = vector.load %arg10[%c0_10, %c0_11] : memref<16x32xf32, #tpu.memory_space<vmem>>, vector<16x32xf32>
      %c0_12 = arith.constant 0 : index
      %c0_13 = arith.constant 0 : index
      %13 = vector.load %arg5[%c0_12, %c0_13] : memref<1x32xf32, #tpu.memory_space<vmem>>, vector<1x32xf32>
      %14 = vector.broadcast %13 : vector<1x32xf32> to vector<16x32xf32>
      %15 = arith.addf %12, %14 : vector<16x32xf32>
      %c0_14 = arith.constant 0 : index
      %c0_15 = arith.constant 0 : index
      %16 = vector.load %arg6[%c0_14, %c0_15] : memref<16x32xf32, #tpu.memory_space<vmem>>, vector<16x32xf32>
      %17 = arith.addf %15, %16 : vector<16x32xf32>
      %cst_16 = arith.constant dense<0.000000e+00> : vector<16xf32>
      %18 = vector.multi_reduction <add>, %17, %cst_16 [1] : vector<16x32xf32> to vector<16xf32>
      %19 = vector.shape_cast %18 : vector<16xf32> to vector<16x1xf32>
      %cst_17 = arith.constant 3.200000e+01 : f32
      %20 = vector.broadcast %cst_17 : f32 to vector<16x1xf32>
      %21 = arith.divf %19, %20 : vector<16x1xf32>
      %22 = vector.broadcast %21 : vector<16x1xf32> to vector<16x32xf32>
      %23 = arith.subf %17, %22 : vector<16x32xf32>
      %24 = arith.mulf %23, %23 : vector<16x32xf32>
      %cst_18 = arith.constant dense<0.000000e+00> : vector<16xf32>
      %25 = vector.multi_reduction <add>, %24, %cst_18 [1] : vector<16x32xf32> to vector<16xf32>
      %26 = vector.shape_cast %25 : vector<16xf32> to vector<16x1xf32>
      %cst_19 = arith.constant 3.200000e+01 : f32
      %27 = vector.broadcast %cst_19 : f32 to vector<16x1xf32>
      %28 = arith.divf %26, %27 : vector<16x1xf32>
      %cst_20 = arith.constant 9.99999974E-6 : f32
      %29 = vector.broadcast %cst_20 : f32 to vector<16x1xf32>
      %30 = arith.addf %28, %29 : vector<16x1xf32>
      %31 = math.rsqrt %30 : vector<16x1xf32>
      %32 = vector.broadcast %31 : vector<16x1xf32> to vector<16x32xf32>
      %33 = arith.mulf %23, %32 : vector<16x32xf32>
      %c0_21 = arith.constant 0 : index
      %c0_22 = arith.constant 0 : index
      %34 = vector.load %arg7[%c0_21, %c0_22] : memref<1x32xf32, #tpu.memory_space<vmem>>, vector<1x32xf32>
      %35 = vector.broadcast %34 : vector<1x32xf32> to vector<16x32xf32>
      %36 = arith.mulf %33, %35 : vector<16x32xf32>
      %c0_23 = arith.constant 0 : index
      %c0_24 = arith.constant 0 : index
      %37 = vector.load %arg8[%c0_23, %c0_24] : memref<1x32xf32, #tpu.memory_space<vmem>>, vector<1x32xf32>
      %38 = vector.broadcast %37 : vector<1x32xf32> to vector<16x32xf32>
      %39 = arith.addf %36, %38 : vector<16x32xf32>
      %c0_25 = arith.constant 0 : index
      %c0_26 = arith.constant 0 : index
      %40 = vector.load %arg9[%c0_25, %c0_26] : memref<16x32xf32, #tpu.memory_space<vmem>>, vector<16x32xf32>
      tpu.vector_store %arg9[%c0_25, %c0_26], %39 {strides = array<i32>} : memref<16x32xf32, #tpu.memory_space<vmem>>, vector<16x32xf32>,
    } else {
    }
    return
  }
  func.func @transform_0(%arg0: i32, %arg1: i32, %arg2: i32) -> (i32, i32) {
    %c0_i32 = arith.constant 0 : i32
    return %arg0, %arg2 : i32, i32
  }
  func.func @transform_1(%arg0: i32, %arg1: i32, %arg2: i32) -> (i32, i32) {
    %c0_i32 = arith.constant 0 : i32
    return %arg2, %arg1 : i32, i32
  }
  func.func @transform_2(%arg0: i32, %arg1: i32, %arg2: i32) -> (i32, i32) {
    %c0_i32 = arith.constant 0 : i32
    %c0_i32_0 = arith.constant 0 : i32
    return %c0_i32, %arg1 : i32, i32
  }
  func.func @transform_3(%arg0: i32, %arg1: i32, %arg2: i32) -> (i32, i32) {
    %c0_i32 = arith.constant 0 : i32
    return %arg0, %arg1 : i32, i32
  }
  func.func @transform_4(%arg0: i32, %arg1: i32, %arg2: i32) -> (i32, i32) {
    %c0_i32 = arith.constant 0 : i32
    %c0_i32_0 = arith.constant 0 : i32
    return %c0_i32, %arg1 : i32, i32
  }
  func.func @transform_5(%arg0: i32, %arg1: i32, %arg2: i32) -> (i32, i32) {
    %c0_i32 = arith.constant 0 : i32
    %c0_i32_0 = arith.constant 0 : i32
    return %c0_i32, %arg1 : i32, i32
  }
  func.func @transform_6(%arg0: i32, %arg1: i32, %arg2: i32) -> (i32, i32) {
    %c0_i32 = arith.constant 0 : i32
    return %arg0, %arg1 : i32, i32
  }
}

module attributes {stable_mosaic.version = 11 : i64} {
  func.func @kernel(%arg0: i32, %arg1: i32, %arg2: i32, %arg3: memref<16x32xf32, #tpu.memory_space<vmem>>, %arg4: memref<32x64xbf16, #tpu.memory_space<vmem>>, %arg5: memref<1x64xf32, #tpu.memory_space<vmem>>, %arg6: memref<16x64xbf16, #tpu.memory_space<vmem>>, %arg7: memref<16x64xf32, #tpu.memory_space<vmem>>) attributes {dimension_semantics = [#tpu.dimension_semantics<parallel>, #tpu.dimension_semantics<parallel>, #tpu.dimension_semantics<arbitrary>], iteration_bounds = array<i64: 1, 1, 1>, scalar_prefetch = 0 : i64, scratch_operands = 1 : i64, tpu.core_type = #tpu.core_type<tc>, window_params = [{transform_indices = @transform_0, window_bounds = array<i64: 16, 32>}, {transform_indices = @transform_1, window_bounds = array<i64: 32, 64>}, {transform_indices = @transform_2, window_bounds = array<i64: 1, 64>}, {transform_indices = @transform_3, window_bounds = array<i64: 16, 64>}]} {
    %c0_i32 = arith.constant 0 : i32
    %0 = arith.cmpi eq, %arg2, %c0_i32 : i32
    %1 = arith.extui %0 : i1 to i32
    %c0_i32_0 = arith.constant 0 : i32
    %2 = arith.cmpi ne, %1, %c0_i32_0 : i32
    scf.if %2 {
      %cst_10 = arith.constant 0.000000e+00 : f32
      %13 = vector.broadcast %cst_10 : f32 to vector<16x64xf32>
      %c0_11 = arith.constant 0 : index
      %c0_12 = arith.constant 0 : index
      %14 = vector.load %arg7[%c0_11, %c0_12] : memref<16x64xf32, #tpu.memory_space<vmem>>, vector<16x64xf32>
      tpu.vector_store %arg7[%c0_11, %c0_12], %13 {strides = array<i32>} : memref<16x64xf32, #tpu.memory_space<vmem>>, vector<16x64xf32>,
    } else {
    }
    %c0 = arith.constant 0 : index
    %c0_1 = arith.constant 0 : index
    %3 = vector.load %arg3[%c0, %c0_1] : memref<16x32xf32, #tpu.memory_space<vmem>>, vector<16x32xf32>
    %4 = arith.truncf %3 : vector<16x32xf32> to vector<16x32xbf16>
    %c0_2 = arith.constant 0 : index
    %c0_3 = arith.constant 0 : index
    %5 = vector.load %arg4[%c0_2, %c0_3] : memref<32x64xbf16, #tpu.memory_space<vmem>>, vector<32x64xbf16>
    %c0_4 = arith.constant 0 : index
    %c0_5 = arith.constant 0 : index
    %6 = vector.load %arg7[%c0_4, %c0_5] : memref<16x64xf32, #tpu.memory_space<vmem>>, vector<16x64xf32>
    %cst = arith.constant dense<0.000000e+00> : vector<16x64xf32>
    %7 = tpu.matmul %4, %5, %cst {dimension_numbers = #tpu.dot_dimension_numbers<[1], [0], [0], [1], [0, 0, 1, 1], [], []>} : vector<16x32xbf16>, vector<32x64xbf16>, vector<16x64xf32> -> vector<16x64xf32>
    %8 = arith.addf %6, %7 : vector<16x64xf32>
    %c0_6 = arith.constant 0 : index
    %c0_7 = arith.constant 0 : index
    %9 = vector.load %arg7[%c0_6, %c0_7] : memref<16x64xf32, #tpu.memory_space<vmem>>, vector<16x64xf32>
    tpu.vector_store %arg7[%c0_6, %c0_7], %8 {strides = array<i32>} : memref<16x64xf32, #tpu.memory_space<vmem>>, vector<16x64xf32>,
    %c0_i32_8 = arith.constant 0 : i32
    %10 = arith.cmpi eq, %arg2, %c0_i32_8 : i32
    %11 = arith.extui %10 : i1 to i32
    %c0_i32_9 = arith.constant 0 : i32
    %12 = arith.cmpi ne, %11, %c0_i32_9 : i32
    scf.if %12 {
      %c0_10 = arith.constant 0 : index
      %c0_11 = arith.constant 0 : index
      %13 = vector.load %arg7[%c0_10, %c0_11] : memref<16x64xf32, #tpu.memory_space<vmem>>, vector<16x64xf32>
      %c0_12 = arith.constant 0 : index
      %c0_13 = arith.constant 0 : index
      %14 = vector.load %arg5[%c0_12, %c0_13] : memref<1x64xf32, #tpu.memory_space<vmem>>, vector<1x64xf32>
      %15 = vector.broadcast %14 : vector<1x64xf32> to vector<16x64xf32>
      %16 = arith.addf %13, %15 : vector<16x64xf32>
      %17 = arith.mulf %16, %16 : vector<16x64xf32>
      %18 = arith.mulf %16, %17 : vector<16x64xf32>
      %cst_14 = arith.constant 4.471500e-02 : f32
      %19 = vector.broadcast %cst_14 : f32 to vector<16x64xf32>
      %20 = arith.mulf %19, %18 : vector<16x64xf32>
      %21 = arith.addf %16, %20 : vector<16x64xf32>
      %cst_15 = arith.constant 0.797884583 : f32
      %22 = vector.broadcast %cst_15 : f32 to vector<16x64xf32>
      %23 = arith.mulf %22, %21 : vector<16x64xf32>
      %24 = math.tanh %23 : vector<16x64xf32>
      %cst_16 = arith.constant 1.000000e+00 : f32
      %25 = vector.broadcast %cst_16 : f32 to vector<16x64xf32>
      %26 = arith.addf %25, %24 : vector<16x64xf32>
      %cst_17 = arith.constant 5.000000e-01 : f32
      %27 = vector.broadcast %cst_17 : f32 to vector<16x64xf32>
      %28 = arith.mulf %27, %26 : vector<16x64xf32>
      %29 = arith.mulf %16, %28 : vector<16x64xf32>
      %30 = arith.truncf %29 : vector<16x64xf32> to vector<16x64xbf16>
      %c0_18 = arith.constant 0 : index
      %c0_19 = arith.constant 0 : index
      %31 = vector.load %arg6[%c0_18, %c0_19] : memref<16x64xbf16, #tpu.memory_space<vmem>>, vector<16x64xbf16>
      tpu.vector_store %arg6[%c0_18, %c0_19], %30 {strides = array<i32>} : memref<16x64xbf16, #tpu.memory_space<vmem>>, vector<16x64xbf16>,
    } else {
    }
    return
  }
  func.func @transform_0(%arg0: i32, %arg1: i32, %arg2: i32) -> (i32, i32) {
    %c0_i32 = arith.constant 0 : i32
    return %arg0, %arg2 : i32, i32
  }
  func.func @transform_1(%arg0: i32, %arg1: i32, %arg2: i32) -> (i32, i32) {
    %c0_i32 = arith.constant 0 : i32
    return %arg2, %arg1 : i32, i32
  }
  func.func @transform_2(%arg0: i32, %arg1: i32, %arg2: i32) -> (i32, i32) {
    %c0_i32 = arith.constant 0 : i32
    %c0_i32_0 = arith.constant 0 : i32
    return %c0_i32, %arg1 : i32, i32
  }
  func.func @transform_3(%arg0: i32, %arg1: i32, %arg2: i32) -> (i32, i32) {
    %c0_i32 = arith.constant 0 : i32
    return %arg0, %arg1 : i32, i32
  }
}

module attributes {stable_mosaic.version = 11 : i64} {
  func.func @kernel(%arg0: i32, %arg1: i32, %arg2: i32, %arg3: memref<16x64xbf16, #tpu.memory_space<vmem>>, %arg4: memref<64x32xbf16, #tpu.memory_space<vmem>>, %arg5: memref<1x32xf32, #tpu.memory_space<vmem>>, %arg6: memref<16x32xf32, #tpu.memory_space<vmem>>, %arg7: memref<1x32xf32, #tpu.memory_space<vmem>>, %arg8: memref<1x32xf32, #tpu.memory_space<vmem>>, %arg9: memref<16x32xf32, #tpu.memory_space<vmem>>, %arg10: memref<16x32xf32, #tpu.memory_space<vmem>>) attributes {dimension_semantics = [#tpu.dimension_semantics<parallel>, #tpu.dimension_semantics<parallel>, #tpu.dimension_semantics<arbitrary>], iteration_bounds = array<i64: 1, 1, 1>, scalar_prefetch = 0 : i64, scratch_operands = 1 : i64, tpu.core_type = #tpu.core_type<tc>, window_params = [{transform_indices = @transform_0, window_bounds = array<i64: 16, 64>}, {transform_indices = @transform_1, window_bounds = array<i64: 64, 32>}, {transform_indices = @transform_2, window_bounds = array<i64: 1, 32>}, {transform_indices = @transform_3, window_bounds = array<i64: 16, 32>}, {transform_indices = @transform_4, window_bounds = array<i64: 1, 32>}, {transform_indices = @transform_5, window_bounds = array<i64: 1, 32>}, {transform_indices = @transform_6, window_bounds = array<i64: 16, 32>}]} {
    %c0_i32 = arith.constant 0 : i32
    %0 = arith.cmpi eq, %arg2, %c0_i32 : i32
    %1 = arith.extui %0 : i1 to i32
    %c0_i32_0 = arith.constant 0 : i32
    %2 = arith.cmpi ne, %1, %c0_i32_0 : i32
    scf.if %2 {
      %cst_10 = arith.constant 0.000000e+00 : f32
      %12 = vector.broadcast %cst_10 : f32 to vector<16x32xf32>
      %c0_11 = arith.constant 0 : index
      %c0_12 = arith.constant 0 : index
      %13 = vector.load %arg10[%c0_11, %c0_12] : memref<16x32xf32, #tpu.memory_space<vmem>>, vector<16x32xf32>
      tpu.vector_store %arg10[%c0_11, %c0_12], %12 {strides = array<i32>} : memref<16x32xf32, #tpu.memory_space<vmem>>, vector<16x32xf32>,
    } else {
    }
    %c0 = arith.constant 0 : index
    %c0_1 = arith.constant 0 : index
    %3 = vector.load %arg3[%c0, %c0_1] : memref<16x64xbf16, #tpu.memory_space<vmem>>, vector<16x64xbf16>
    %c0_2 = arith.constant 0 : index
    %c0_3 = arith.constant 0 : index
    %4 = vector.load %arg4[%c0_2, %c0_3] : memref<64x32xbf16, #tpu.memory_space<vmem>>, vector<64x32xbf16>
    %c0_4 = arith.constant 0 : index
    %c0_5 = arith.constant 0 : index
    %5 = vector.load %arg10[%c0_4, %c0_5] : memref<16x32xf32, #tpu.memory_space<vmem>>, vector<16x32xf32>
    %cst = arith.constant dense<0.000000e+00> : vector<16x32xf32>
    %6 = tpu.matmul %3, %4, %cst {dimension_numbers = #tpu.dot_dimension_numbers<[1], [0], [0], [1], [0, 0, 1, 1], [], []>} : vector<16x64xbf16>, vector<64x32xbf16>, vector<16x32xf32> -> vector<16x32xf32>
    %7 = arith.addf %5, %6 : vector<16x32xf32>
    %c0_6 = arith.constant 0 : index
    %c0_7 = arith.constant 0 : index
    %8 = vector.load %arg10[%c0_6, %c0_7] : memref<16x32xf32, #tpu.memory_space<vmem>>, vector<16x32xf32>
    tpu.vector_store %arg10[%c0_6, %c0_7], %7 {strides = array<i32>} : memref<16x32xf32, #tpu.memory_space<vmem>>, vector<16x32xf32>,
    %c0_i32_8 = arith.constant 0 : i32
    %9 = arith.cmpi eq, %arg2, %c0_i32_8 : i32
    %10 = arith.extui %9 : i1 to i32
    %c0_i32_9 = arith.constant 0 : i32
    %11 = arith.cmpi ne, %10, %c0_i32_9 : i32
    scf.if %11 {
      %c0_10 = arith.constant 0 : index
      %c0_11 = arith.constant 0 : index
      %12 = vector.load %arg10[%c0_10, %c0_11] : memref<16x32xf32, #tpu.memory_space<vmem>>, vector<16x32xf32>
      %c0_12 = arith.constant 0 : index
      %c0_13 = arith.constant 0 : index
      %13 = vector.load %arg5[%c0_12, %c0_13] : memref<1x32xf32, #tpu.memory_space<vmem>>, vector<1x32xf32>
      %14 = vector.broadcast %13 : vector<1x32xf32> to vector<16x32xf32>
      %15 = arith.addf %12, %14 : vector<16x32xf32>
      %c0_14 = arith.constant 0 : index
      %c0_15 = arith.constant 0 : index
      %16 = vector.load %arg6[%c0_14, %c0_15] : memref<16x32xf32, #tpu.memory_space<vmem>>, vector<16x32xf32>
      %17 = arith.addf %15, %16 : vector<16x32xf32>
      %cst_16 = arith.constant dense<0.000000e+00> : vector<16xf32>
      %18 = vector.multi_reduction <add>, %17, %cst_16 [1] : vector<16x32xf32> to vector<16xf32>
      %19 = vector.shape_cast %18 : vector<16xf32> to vector<16x1xf32>
      %cst_17 = arith.constant 3.200000e+01 : f32
      %20 = vector.broadcast %cst_17 : f32 to vector<16x1xf32>
      %21 = arith.divf %19, %20 : vector<16x1xf32>
      %22 = vector.broadcast %21 : vector<16x1xf32> to vector<16x32xf32>
      %23 = arith.subf %17, %22 : vector<16x32xf32>
      %24 = arith.mulf %23, %23 : vector<16x32xf32>
      %cst_18 = arith.constant dense<0.000000e+00> : vector<16xf32>
      %25 = vector.multi_reduction <add>, %24, %cst_18 [1] : vector<16x32xf32> to vector<16xf32>
      %26 = vector.shape_cast %25 : vector<16xf32> to vector<16x1xf32>
      %cst_19 = arith.constant 3.200000e+01 : f32
      %27 = vector.broadcast %cst_19 : f32 to vector<16x1xf32>
      %28 = arith.divf %26, %27 : vector<16x1xf32>
      %cst_20 = arith.constant 9.99999974E-6 : f32
      %29 = vector.broadcast %cst_20 : f32 to vector<16x1xf32>
      %30 = arith.addf %28, %29 : vector<16x1xf32>
      %31 = math.rsqrt %30 : vector<16x1xf32>
      %32 = vector.broadcast %31 : vector<16x1xf32> to vector<16x32xf32>
      %33 = arith.mulf %23, %32 : vector<16x32xf32>
      %c0_21 = arith.constant 0 : index
      %c0_22 = arith.constant 0 : index
      %34 = vector.load %arg7[%c0_21, %c0_22] : memref<1x32xf32, #tpu.memory_space<vmem>>, vector<1x32xf32>
      %35 = vector.broadcast %34 : vector<1x32xf32> to vector<16x32xf32>
      %36 = arith.mulf %33, %35 : vector<16x32xf32>
      %c0_23 = arith.constant 0 : index
      %c0_24 = arith.constant 0 : index
      %37 = vector.load %arg8[%c0_23, %c0_24] : memref<1x32xf32, #tpu.memory_space<vmem>>, vector<1x32xf32>
      %38 = vector.broadcast %37 : vector<1x32xf32> to vector<16x32xf32>
      %39 = arith.addf %36, %38 : vector<16x32xf32>
      %c0_25 = arith.constant 0 : index
      %c0_26 = arith.constant 0 : index
      %40 = vector.load %arg9[%c0_25, %c0_26] : memref<16x32xf32, #tpu.memory_space<vmem>>, vector<16x32xf32>
      tpu.vector_store %arg9[%c0_25, %c0_26], %39 {strides = array<i32>} : memref<16x32xf32, #tpu.memory_space<vmem>>, vector<16x32xf32>,
    } else {
    }
    return
  }
  func.func @transform_0(%arg0: i32, %arg1: i32, %arg2: i32) -> (i32, i32) {
    %c0_i32 = arith.constant 0 : i32
    return %arg0, %arg2 : i32, i32
  }
  func.func @transform_1(%arg0: i32, %arg1: i32, %arg2: i32) -> (i32, i32) {
    %c0_i32 = arith.constant 0 : i32
    return %arg2, %arg1 : i32, i32
  }
  func.func @transform_2(%arg0: i32, %arg1: i32, %arg2: i32) -> (i32, i32) {
    %c0_i32 = arith.constant 0 : i32
    %c0_i32_0 = arith.constant 0 : i32
    return %c0_i32, %arg1 : i32, i32
  }
  func.func @transform_3(%arg0: i32, %arg1: i32, %arg2: i32) -> (i32, i32) {
    %c0_i32 = arith.constant 0 : i32
    return %arg0, %arg1 : i32, i32
  }
  func.func @transform_4(%arg0: i32, %arg1: i32, %arg2: i32) -> (i32, i32) {
    %c0_i32 = arith.constant 0 : i32
    %c0_i32_0 = arith.constant 0 : i32
    return %c0_i32, %arg1 : i32, i32
  }
  func.func @transform_5(%arg0: i32, %arg1: i32, %arg2: i32) -> (i32, i32) {
    %c0_i32 = arith.constant 0 : i32
    %c0_i32_0 = arith.constant 0 : i32
    return %c0_i32, %arg1 : i32, i32
  }
  func.func @transform_6(%arg0: i32, %arg1: i32, %arg2: i32) -> (i32, i32) {
    %c0_i32 = arith.constant 0 : i32
    return %arg0, %arg1 : i32, i32
  }
}

module attributes {stable_mosaic.version = 11 : i64} {
  func.func @kernel(%arg0: i32, %arg1: i32, %arg2: i32, %arg3: memref<16x32xf32, #tpu.memory_space<vmem>>, %arg4: memref<64x32xf32, #tpu.memory_space<vmem>>, %arg5: memref<1x32xf32, #tpu.memory_space<vmem>>, %arg6: memref<1x32xf32, #tpu.memory_space<vmem>>, %arg7: memref<16x64xf32, #tpu.memory_space<vmem>>, %arg8: memref<16x64xf32, #tpu.memory_space<vmem>>) attributes {dimension_semantics = [#tpu.dimension_semantics<parallel>, #tpu.dimension_semantics<parallel>, #tpu.dimension_semantics<arbitrary>], iteration_bounds = array<i64: 1, 1, 1>, scalar_prefetch = 0 : i64, scratch_operands = 1 : i64, tpu.core_type = #tpu.core_type<tc>, window_params = [{transform_indices = @transform_0, window_bounds = array<i64: 16, 32>}, {transform_indices = @transform_1, window_bounds = array<i64: 64, 32>}, {transform_indices = @transform_2, window_bounds = array<i64: 1, 32>}, {transform_indices = @transform_3, window_bounds = array<i64: 1, 32>}, {transform_indices = @transform_4, window_bounds = array<i64: 16, 64>}]} {
    %c0_i32 = arith.constant 0 : i32
    %0 = arith.cmpi eq, %arg2, %c0_i32 : i32
    %1 = arith.extui %0 : i1 to i32
    %c0_i32_0 = arith.constant 0 : i32
    %2 = arith.cmpi ne, %1, %c0_i32_0 : i32
    scf.if %2 {
      %cst_19 = arith.constant 0.000000e+00 : f32
      %36 = vector.broadcast %cst_19 : f32 to vector<16x64xf32>
      %c0_20 = arith.constant 0 : index
      %c0_21 = arith.constant 0 : index
      %37 = vector.load %arg8[%c0_20, %c0_21] : memref<16x64xf32, #tpu.memory_space<vmem>>, vector<16x64xf32>
      tpu.vector_store %arg8[%c0_20, %c0_21], %36 {strides = array<i32>} : memref<16x64xf32, #tpu.memory_space<vmem>>, vector<16x64xf32>,
    } else {
    }
    %c0 = arith.constant 0 : index
    %c0_1 = arith.constant 0 : index
    %3 = vector.load %arg3[%c0, %c0_1] : memref<16x32xf32, #tpu.memory_space<vmem>>, vector<16x32xf32>
    %cst = arith.constant dense<0.000000e+00> : vector<16xf32>
    %4 = vector.multi_reduction <add>, %3, %cst [1] : vector<16x32xf32> to vector<16xf32>
    %5 = vector.shape_cast %4 : vector<16xf32> to vector<16x1xf32>
    %cst_2 = arith.constant 3.200000e+01 : f32
    %6 = vector.broadcast %cst_2 : f32 to vector<16x1xf32>
    %7 = arith.divf %5, %6 : vector<16x1xf32>
    %8 = vector.broadcast %7 : vector<16x1xf32> to vector<16x32xf32>
    %9 = arith.subf %3, %8 : vector<16x32xf32>
    %10 = arith.mulf %9, %9 : vector<16x32xf32>
    %cst_3 = arith.constant dense<0.000000e+00> : vector<16xf32>
    %11 = vector.multi_reduction <add>, %10, %cst_3 [1] : vector<16x32xf32> to vector<16xf32>
    %12 = vector.shape_cast %11 : vector<16xf32> to vector<16x1xf32>
    %cst_4 = arith.constant 3.200000e+01 : f32
    %13 = vector.broadcast %cst_4 : f32 to vector<16x1xf32>
    %14 = arith.divf %12, %13 : vector<16x1xf32>
    %cst_5 = arith.constant 9.99999974E-6 : f32
    %15 = vector.broadcast %cst_5 : f32 to vector<16x1xf32>
    %16 = arith.addf %14, %15 : vector<16x1xf32>
    %17 = math.rsqrt %16 : vector<16x1xf32>
    %18 = vector.broadcast %17 : vector<16x1xf32> to vector<16x32xf32>
    %19 = arith.mulf %9, %18 : vector<16x32xf32>
    %c0_6 = arith.constant 0 : index
    %c0_7 = arith.constant 0 : index
    %20 = vector.load %arg5[%c0_6, %c0_7] : memref<1x32xf32, #tpu.memory_space<vmem>>, vector<1x32xf32>
    %21 = vector.broadcast %20 : vector<1x32xf32> to vector<16x32xf32>
    %22 = arith.mulf %19, %21 : vector<16x32xf32>
    %c0_8 = arith.constant 0 : index
    %c0_9 = arith.constant 0 : index
    %23 = vector.load %arg6[%c0_8, %c0_9] : memref<1x32xf32, #tpu.memory_space<vmem>>, vector<1x32xf32>
    %24 = vector.broadcast %23 : vector<1x32xf32> to vector<16x32xf32>
    %25 = arith.addf %22, %24 : vector<16x32xf32>
    %26 = arith.truncf %25 : vector<16x32xf32> to vector<16x32xbf16>
    %c0_10 = arith.constant 0 : index
    %c0_11 = arith.constant 0 : index
    %27 = vector.load %arg4[%c0_10, %c0_11] : memref<64x32xf32, #tpu.memory_space<vmem>>, vector<64x32xf32>
    %28 = arith.truncf %27 : vector<64x32xf32> to vector<64x32xbf16>
    %c0_12 = arith.constant 0 : index
    %c0_13 = arith.constant 0 : index
    %29 = vector.load %arg8[%c0_12, %c0_13] : memref<16x64xf32, #tpu.memory_space<vmem>>, vector<16x64xf32>
    %cst_14 = arith.constant dense<0.000000e+00> : vector<16x64xf32>
    %30 = tpu.matmul %26, %28, %cst_14 {dimension_numbers = #tpu.dot_dimension_numbers<[1], [1], [0], [0], [0, 0, 1, 0], [], []>} : vector<16x32xbf16>, vector<64x32xbf16>, vector<16x64xf32> -> vector<16x64xf32>
    %31 = arith.addf %29, %30 : vector<16x64xf32>
    %c0_15 = arith.constant 0 : index
    %c0_16 = arith.constant 0 : index
    %32 = vector.load %arg8[%c0_15, %c0_16] : memref<16x64xf32, #tpu.memory_space<vmem>>, vector<16x64xf32>
    tpu.vector_store %arg8[%c0_15, %c0_16], %31 {strides = array<i32>} : memref<16x64xf32, #tpu.memory_space<vmem>>, vector<16x64xf32>,
    %c0_i32_17 = arith.constant 0 : i32
    %33 = arith.cmpi eq, %arg2, %c0_i32_17 : i32
    %34 = arith.extui %33 : i1 to i32
    %c0_i32_18 = arith.constant 0 : i32
    %35 = arith.cmpi ne, %34, %c0_i32_18 : i32
    scf.if %35 {
      %c0_19 = arith.constant 0 : index
      %c0_20 = arith.constant 0 : index
      %36 = vector.load %arg8[%c0_19, %c0_20] : memref<16x64xf32, #tpu.memory_space<vmem>>, vector<16x64xf32>
      %c0_21 = arith.constant 0 : index
      %c0_22 = arith.constant 0 : index
      %37 = vector.load %arg7[%c0_21, %c0_22] : memref<16x64xf32, #tpu.memory_space<vmem>>, vector<16x64xf32>
      tpu.vector_store %arg7[%c0_21, %c0_22], %36 {strides = array<i32>} : memref<16x64xf32, #tpu.memory_space<vmem>>, vector<16x64xf32>,
    } else {
    }
    return
  }
  func.func @transform_0(%arg0: i32, %arg1: i32, %arg2: i32) -> (i32, i32) {
    %c0_i32 = arith.constant 0 : i32
    return %arg0, %arg2 : i32, i32
  }
  func.func @transform_1(%arg0: i32, %arg1: i32, %arg2: i32) -> (i32, i32) {
    %c0_i32 = arith.constant 0 : i32
    return %arg1, %arg2 : i32, i32
  }
  func.func @transform_2(%arg0: i32, %arg1: i32, %arg2: i32) -> (i32, i32) {
    %c0_i32 = arith.constant 0 : i32
    %c0_i32_0 = arith.constant 0 : i32
    return %c0_i32, %arg2 : i32, i32
  }
  func.func @transform_3(%arg0: i32, %arg1: i32, %arg2: i32) -> (i32, i32) {
    %c0_i32 = arith.constant 0 : i32
    %c0_i32_0 = arith.constant 0 : i32
    return %c0_i32, %arg2 : i32, i32
  }
  func.func @transform_4(%arg0: i32, %arg1: i32, %arg2: i32) -> (i32, i32) {
    %c0_i32 = arith.constant 0 : i32
    return %arg0, %arg1 : i32, i32
  }
}

</mosaic_0001>

<llo_original>
// kernel: alibi_transformer_forward.12
$region0: #{alibi_transformer_forward.12}
  #allocation0 [shape = 'u32[]', space=smem, size = 0x4, offset = 0x4, fixed_abs, tag = 'smem constant byte address 0x4 - core index']
  #allocation1 [shape = 'u32[72,128]{1,0:T(1,128)}', space=vmem, size = 0x9000, scoped, tag = 'internal scratch']
  #allocation2 [shape = 'f32[8,1]{1,0:T(8,128)}', space=vmem, size = 0x1000, scoped, tag = 'scratch operand']
  #allocation3 [shape = 'f32[8,1]{1,0:T(8,128)}', space=vmem, size = 0x1000, scoped, tag = 'scratch operand']
  #allocation4 [shape = 'f32[8,8]{1,0:T(8,128)}', space=vmem, size = 0x1000, scoped, tag = 'scratch operand']
  %s0 = inlined_call_operand.vmem [shape: f32[4], index: 0, kind: input, shape index: {}]
  %s1 = inlined_call_operand.vmem [shape: bf16[3,2,4,8,8], index: 1, kind: input, shape index: {}, may-alias: {1,2,3}]
  %s2 = inlined_call_operand.vmem [shape: bf16[3,2,4,8,8], index: 2, kind: input, shape index: {}, may-alias: {1,2,3}]
  %s3 = inlined_call_operand.vmem [shape: bf16[3,2,4,8,8], index: 3, kind: input, shape index: {}, may-alias: {1,2,3}]
  %s4 = inlined_call_operand.vmem [shape: bf16[2,4,8,8], index: 4, kind: output, shape index: {}]
  %s5 = sld [smem:[#allocation0]]
  $region65: #{alibi_transformer_forward.12} parent=0
    _
  %s7 = ssub.s32 1, %s5
  %s8 = scalar_select 0, %s7, %s5
  $region1: #{alibi_transformer_forward.12} parent=0
    #allocation5 [shape = 'u8[512]{0}', space=smem, size = 0x200, scoped, tag = 'input window, operand 0, single buffered']
    #allocation6 [shape = 's32[2]{0}', space=sflag, size = 0x8, scoped, tag = 'scoped memory for alibi_transformer_forward.12']
    %9 = vsyncpa [#allocation6], 0
    loop: start=0, step=1, limit=10
    $region2: #{alibi_transformer_forward.12} parent=1 // loop_pre_header
      _
    $region3: #{alibi_transformer_forward.12} parent=1 // loop_header
      %s11 = sphi 0, %s15
      %p12 = scmp.ge.s32.totalorder %s11, 10
      %s18 = sphi 0, %s44
      %s19 = sphi 0, %s40
      %s20 = sphi 0, %s36
      %s21 = sphi 0, %s32
      %s22 = sphi 0, %s18
      %s23 = sphi 0, %s19
      %s24 = sphi 0, %s20
      %s25 = sphi 0, %s21
      %s26 = sphi 0, %s22
      %s27 = sphi 0, %s23
      %s28 = sphi 0, %s24
      %s29 = sphi 0, %s25
      %s45 = sphi 0, %s45
      %s47 = sphi 0, %s45
      %s48 = sphi 0, %s47
      %s62 = sphi 0, %s48
      %s72 = sphi 0, %s74
      %s75 = sphi 0, %s72
      %s76 = sphi 0, %s75
      %s92 = sphi 0, %s76
      %s102 = sphi 0, %s104
      %s105 = sphi 0, %s102
      %s106 = sphi 0, %s105
      %s122 = sphi 0, %s106
      %s132 = sphi 0, %s134
      %s135 = sphi 0, %s132
      %s136 = sphi 0, %s135
      %s152 = sphi 0, %s136
      %s162 = sphi 0, %s164
      %s165 = sphi 0, %s162
      %s166 = sphi 0, %s165
      %s182 = sphi 0, %s166
    $region4: #{alibi_transformer_forward.12} parent=1 // loop_header_branch
      %14 = sbr.rel (%p12) target = $region8
    $region5: #{alibi_transformer_forward.12} parent=1 // loop_body
      %s16 = ssub.s32 %s11, 1
      %s17 = ssub.s32 %s11, 2
      %s30 = sadd.s32 1, %s21
      %p31 = scmp.ge.s32.totalorder %s30, 1
      %s32 = scalar_select %p31, 0, %s30
      %s33 = sadd.s32 1, %s20
      %s34 = scalar_select %p31, %s33, %s20
      %p35 = scmp.ge.s32.totalorder %s34, 1
      %s36 = scalar_select %p35, 0, %s34
      %s37 = sadd.s32 1, %s19
      %s38 = scalar_select %p35, %s37, %s19
      %p39 = scmp.ge.s32.totalorder %s38, 4
      %s40 = scalar_select %p39, 0, %s38
      %s41 = sadd.s32 1, %s18
      %s42 = scalar_select %p39, %s41, %s18
      %p43 = scmp.ge.s32.totalorder %s42, 2
      %s44 = scalar_select %p43, 0, %s42
      %s46 = sadd.s32 %s45, 1
      %p49 = scmp.eq.s32.totalorder %s11, 7
      %p50 = scmp.ne.s32.totalorder %s45, %s47
      %p51 = scmp.eq.s32.totalorder %s11, 0
      %p52 = por %p50, %p51
      %p53 = scmp.ne.s32.totalorder %s45, %s47
      %p54 = scmp.eq.s32.totalorder %s16, 7
      %p55 = por %p53, %p54
      %p56 = scmp.ne.s32.totalorder %s47, %s48
      %p57 = scmp.eq.s32.totalorder %s16, 0
      %p58 = por %p56, %p57
      %p59 = scmp.ne.s32.totalorder %s47, %s48
      %p60 = scmp.eq.s32.totalorder %s17, 7
      %p61 = por %p59, %p60
      %p63 = scmp.ne.s32.totalorder %s48, %s62
      %p64 = scmp.eq.s32.totalorder %s17, 0
      %p65 = por %p63, %p64
      %s66 = ssub.s32 %s18, %s44
      %s67 = ssub.s32 %s19, %s40
      %s68 = sor.u32 %s66, %s67
      %s69 = ssub.s32 %s20, %s36
      %s70 = sor.u32 %s68, %s69
      %p71 = scmp.eq.s32.totalorder %s70, 0
      %s73 = sadd.s32 %s72, 1
      %s74 = scalar_select %p71, %s72, %s73
      %p77 = pneg %p71
      %p78 = scmp.eq.s32.totalorder %s11, 7
      %p79 = por %p77, %p78
      %p80 = scmp.ne.s32.totalorder %s72, %s75
      %p81 = scmp.eq.s32.totalorder %s11, 0
      %p82 = por %p80, %p81
      %p83 = scmp.ne.s32.totalorder %s72, %s75
      %p84 = scmp.eq.s32.totalorder %s16, 7
      %p85 = por %p83, %p84
      %p86 = scmp.ne.s32.totalorder %s75, %s76
      %p87 = scmp.eq.s32.totalorder %s16, 0
      %p88 = por %p86, %p87
      %p89 = scmp.ne.s32.totalorder %s75, %s76
      %p90 = scmp.eq.s32.totalorder %s17, 7
      %p91 = por %p89, %p90
      %p93 = scmp.ne.s32.totalorder %s76, %s92
      %p94 = scmp.eq.s32.totalorder %s17, 0
      %p95 = por %p93, %p94
      %s96 = ssub.s32 %s18, %s44
      %s97 = ssub.s32 %s19, %s40
      %s98 = sor.u32 %s96, %s97
      %s99 = ssub.s32 %s21, %s32
      %s100 = sor.u32 %s98, %s99
      %p101 = scmp.eq.s32.totalorder %s100, 0
      %s103 = sadd.s32 %s102, 1
      %s104 = scalar_select %p101, %s102, %s103
      %p107 = pneg %p101
      %p108 = scmp.eq.s32.totalorder %s11, 7
      %p109 = por %p107, %p108
      %p110 = scmp.ne.s32.totalorder %s102, %s105
      %p111 = scmp.eq.s32.totalorder %s11, 0
      %p112 = por %p110, %p111
      %p113 = scmp.ne.s32.totalorder %s102, %s105
      %p114 = scmp.eq.s32.totalorder %s16, 7
      %p115 = por %p113, %p114
      %p116 = scmp.ne.s32.totalorder %s105, %s106
      %p117 = scmp.eq.s32.totalorder %s16, 0
      %p118 = por %p116, %p117
      %p119 = scmp.ne.s32.totalorder %s105, %s106
      %p120 = scmp.eq.s32.totalorder %s17, 7
      %p121 = por %p119, %p120
      %p123 = scmp.ne.s32.totalorder %s106, %s122
      %p124 = scmp.eq.s32.totalorder %s17, 0
      %p125 = por %p123, %p124
      %s126 = ssub.s32 %s18, %s44
      %s127 = ssub.s32 %s19, %s40
      %s128 = sor.u32 %s126, %s127
      %s129 = ssub.s32 %s21, %s32
      %s130 = sor.u32 %s128, %s129
      %p131 = scmp.eq.s32.totalorder %s130, 0
      %s133 = sadd.s32 %s132, 1
      %s134 = scalar_select %p131, %s132, %s133
      %p137 = pneg %p131
      %p138 = scmp.eq.s32.totalorder %s11, 7
      %p139 = por %p137, %p138
      %p140 = scmp.ne.s32.totalorder %s132, %s135
      %p141 = scmp.eq.s32.totalorder %s11, 0
      %p142 = por %p140, %p141
      %p143 = scmp.ne.s32.totalorder %s132, %s135
      %p144 = scmp.eq.s32.totalorder %s16, 7
      %p145 = por %p143, %p144
      %p146 = scmp.ne.s32.totalorder %s135, %s136
      %p147 = scmp.eq.s32.totalorder %s16, 0
      %p148 = por %p146, %p147
      %p149 = scmp.ne.s32.totalorder %s135, %s136
      %p150 = scmp.eq.s32.totalorder %s17, 7
      %p151 = por %p149, %p150
      %p153 = scmp.ne.s32.totalorder %s136, %s152
      %p154 = scmp.eq.s32.totalorder %s17, 0
      %p155 = por %p153, %p154
      %s156 = ssub.s32 %s18, %s44
      %s157 = ssub.s32 %s19, %s40
      %s158 = sor.u32 %s156, %s157
      %s159 = ssub.s32 %s20, %s36
      %s160 = sor.u32 %s158, %s159
      %p161 = scmp.eq.s32.totalorder %s160, 0
      %s163 = sadd.s32 %s162, 1
      %s164 = scalar_select %p161, %s162, %s163
      %p167 = pneg %p161
      %p168 = scmp.eq.s32.totalorder %s11, 7
      %p169 = por %p167, %p168
      %p170 = scmp.ne.s32.totalorder %s162, %s165
      %p171 = scmp.eq.s32.totalorder %s11, 0
      %p172 = por %p170, %p171
      %p173 = scmp.ne.s32.totalorder %s162, %s165
      %p174 = scmp.eq.s32.totalorder %s16, 7
      %p175 = por %p173, %p174
      %p176 = scmp.ne.s32.totalorder %s165, %s166
      %p177 = scmp.eq.s32.totalorder %s16, 0
      %p178 = por %p176, %p177
      %p179 = scmp.ne.s32.totalorder %s165, %s166
      %p180 = scmp.eq.s32.totalorder %s17, 7
      %p181 = por %p179, %p180
      %p183 = scmp.ne.s32.totalorder %s166, %s182
      %p184 = scmp.eq.s32.totalorder %s17, 0
      %p185 = por %p183, %p184
      %p186 = scmp.le.s32.totalorder 1, %s11
      %p187 = scmp.lt.s32.totalorder %s11, 9
      %p188 = pnand %p186, %p187
      %p189 = pneg %p188
      // Predicated region
      $region9: #{alibi_transformer_forward.12} parent=5 // pred_check
        _
      $region10: #{alibi_transformer_forward.12} parent=5 // pred_check_branch
        %191 = sbr.rel (%p188) target = $region12
      $region11: #{alibi_transformer_forward.12} parent=5 // pred_region
        %s192 = ssub.s32 %s11, 1
        // Predicated region
        $region13: #{alibi_transformer_forward.12} parent=11 // pred_check
          %p193 = pneg %p58
        $region14: #{alibi_transformer_forward.12} parent=11 // pred_check_branch
          %195 = sbr.rel (%p193) target = $region16
        $region15: #{alibi_transformer_forward.12} parent=11 // pred_region
          %197 = vsyncadd [#allocation6], 0
          %s199 = sshll.u32 %s0, 4
          %s200 = int_to_ptr.vmem [resolvable:$true] %s199
          %202 = dma.vmem_to_smem %s200, 16, [#allocation5], [#allocation6]
        $region16: #{alibi_transformer_forward.12} parent=11 // pred_fallthru
          _
      $region12: #{alibi_transformer_forward.12} parent=5 // pred_fallthru
        _
      %p203 = scmp.lt.s32.totalorder %s11, 8
      // Predicated region
      $region17: #{alibi_transformer_forward.12} parent=5 // pred_check
        %p204 = pneg %p203
      $region18: #{alibi_transformer_forward.12} parent=5 // pred_check_branch
        %206 = sbr.rel (%p204) target = $region20
      $region19: #{alibi_transformer_forward.12} parent=5 // pred_region
        // Predicated region
        $region21: #{alibi_transformer_forward.12} parent=19 // pred_check
          %p207 = pneg %p82
        $region22: #{alibi_transformer_forward.12} parent=19 // pred_check_branch
          %209 = sbr.rel (%p207) target = $region24
        $region23: #{alibi_transformer_forward.12} parent=19 // pred_region
          %p210 = scmp.lt.s32.totalorder %s18, 1
          %s211 = scalar_select %p210, %s18, 1
          %p212 = scmp.lt.s32.totalorder %s19, 3
          %s213 = scalar_select %p212, %s19, 3
          %p214 = scmp.lt.s32.totalorder %s20, 0
          %s215 = scalar_select %p214, %s20, 0
          %s216 = sadd.s32 %s215, %s213
          %s217 = smul.addr %s211, 4
          %s218 = sadd.s32 %s216, %s217
          %s219 = smul.addr %s218, 4
          %s220 = scalar_lea.vmem %s1, %s219
        $region24: #{alibi_transformer_forward.12} parent=19 // pred_fallthru
          _
        // Predicated region
        $region25: #{alibi_transformer_forward.12} parent=19 // pred_check
          %p221 = pneg %p112
        $region26: #{alibi_transformer_forward.12} parent=19 // pred_check_branch
          %223 = sbr.rel (%p221) target = $region28
        $region27: #{alibi_transformer_forward.12} parent=19 // pred_region
          %p224 = scmp.lt.s32.totalorder %s18, 1
          %s225 = scalar_select %p224, %s18, 1
          %p226 = scmp.lt.s32.totalorder %s19, 3
          %s227 = scalar_select %p226, %s19, 3
          %p228 = scmp.lt.s32.totalorder %s21, 0
          %s229 = scalar_select %p228, %s21, 0
          %s230 = sadd.s32 %s229, %s227
          %s231 = smul.addr %s225, 4
          %s232 = sadd.s32 %s230, %s231
          %s233 = sadd.s32 %s232, 8
          %s234 = smul.addr %s233, 4
          %s235 = scalar_lea.vmem %s2, %s234
        $region28: #{alibi_transformer_forward.12} parent=19 // pred_fallthru
          _
        // Predicated region
        $region29: #{alibi_transformer_forward.12} parent=19 // pred_check
          %p236 = pneg %p142
        $region30: #{alibi_transformer_forward.12} parent=19 // pred_check_branch
          %238 = sbr.rel (%p236) target = $region32
        $region31: #{alibi_transformer_forward.12} parent=19 // pred_region
          %p239 = scmp.lt.s32.totalorder %s18, 1
          %s240 = scalar_select %p239, %s18, 1
          %p241 = scmp.lt.s32.totalorder %s19, 3
          %s242 = scalar_select %p241, %s19, 3
          %p243 = scmp.lt.s32.totalorder %s21, 0
          %s244 = scalar_select %p243, %s21, 0
          %s245 = sadd.s32 %s244, %s242
          %s246 = smul.addr %s240, 4
          %s247 = sadd.s32 %s245, %s246
          %s248 = sadd.s32 %s247, 16
          %s249 = smul.addr %s248, 4
          %s250 = scalar_lea.vmem %s3, %s249
        $region32: #{alibi_transformer_forward.12} parent=19 // pred_fallthru
          _
      $region20: #{alibi_transformer_forward.12} parent=5 // pred_fallthru
        _
      %p251 = scmp.le.s32.totalorder 1, %s11
      %p252 = scmp.lt.s32.totalorder %s11, 9
      %p253 = pnand %p251, %p252
      %p254 = pneg %p253
      // Predicated region
      $region33: #{alibi_transformer_forward.12} parent=5 // pred_check
        _
      $region34: #{alibi_transformer_forward.12} parent=5 // pred_check_branch
        %256 = sbr.rel (%p253) target = $region36
      $region35: #{alibi_transformer_forward.12} parent=5 // pred_region
        %s257 = ssub.s32 %s11, 1
        // Predicated region
        $region37: #{alibi_transformer_forward.12} parent=35 // pred_check
          %p258 = pneg %p58
        $region38: #{alibi_transformer_forward.12} parent=35 // pred_check_branch
          %260 = sbr.rel (%p258) target = $region40
        $region39: #{alibi_transformer_forward.12} parent=35 // pred_region
          %262 = dma.done [#allocation6], 16
        $region40: #{alibi_transformer_forward.12} parent=35 // pred_fallthru
          _
        %263 = sfence
        %p264 = pneg %p58
        %p265 = pneg %p55
        %p266 = scmp.lt.s32.totalorder %s22, 1
        %s267 = scalar_select %p266, %s22, 1
        %p268 = scmp.lt.s32.totalorder %s23, 3
        %s269 = scalar_select %p268, %s23, 3
        %p270 = scmp.lt.s32.totalorder %s24, 0
        %s271 = scalar_select %p270, %s24, 0
        %s272 = sadd.s32 %s271, %s269
        %s273 = smul.addr %s267, 4
        %s274 = sadd.s32 %s272, %s273
        %s275 = smul.addr %s274, 4
        %s276 = scalar_lea.vmem %s1, %s275
        %p277 = pneg %p88
        %p278 = pneg %p85
        %p279 = scmp.lt.s32.totalorder %s22, 1
        %s280 = scalar_select %p279, %s22, 1
        %p281 = scmp.lt.s32.totalorder %s23, 3
        %s282 = scalar_select %p281, %s23, 3
        %p283 = scmp.lt.s32.totalorder %s25, 0
        %s284 = scalar_select %p283, %s25, 0
        %s285 = sadd.s32 %s284, %s282
        %s286 = smul.addr %s280, 4
        %s287 = sadd.s32 %s285, %s286
        %s288 = sadd.s32 %s287, 8
        %s289 = smul.addr %s288, 4
        %s290 = scalar_lea.vmem %s2, %s289
        %p291 = pneg %p118
        %p292 = pneg %p115
        %p293 = scmp.lt.s32.totalorder %s22, 1
        %s294 = scalar_select %p293, %s22, 1
        %p295 = scmp.lt.s32.totalorder %s23, 3
        %s296 = scalar_select %p295, %s23, 3
        %p297 = scmp.lt.s32.totalorder %s25, 0
        %s298 = scalar_select %p297, %s25, 0
        %s299 = sadd.s32 %s298, %s296
        %s300 = smul.addr %s294, 4
        %s301 = sadd.s32 %s299, %s300
        %s302 = sadd.s32 %s301, 16
        %s303 = smul.addr %s302, 4
        %s304 = scalar_lea.vmem %s3, %s303
        %p305 = pneg %p148
        %p306 = pneg %p145
        %p307 = pneg %p178
        %p308 = pneg %p175
        %p309 = scmp.lt.s32.totalorder %s22, 1
        %s310 = scalar_select %p309, %s22, 1
        %p311 = scmp.lt.s32.totalorder %s23, 3
        %s312 = scalar_select %p311, %s23, 3
        %p313 = scmp.lt.s32.totalorder %s24, 0
        %s314 = scalar_select %p313, %s24, 0
        %s315 = sadd.s32 %s314, %s312
        %s316 = smul.addr %s310, 4
        %s317 = sadd.s32 %s315, %s316
        %s318 = smul.addr %s317, 4
        %s319 = scalar_lea.vmem %s4, %s318
        %p320 = scmp.lt.s32.totalorder %s22, 1
        %s321 = scalar_select %p320, %s22, 1
        %p322 = scmp.lt.s32.totalorder %s23, 3
        %s323 = scalar_select %p322, %s23, 3
        %p324 = scmp.lt.s32.totalorder %s24, 0
        %s325 = scalar_select %p324, %s24, 0
        %s326 = sadd.s32 %s325, %s323
        %s327 = smul.addr %s321, 4
        %s328 = sadd.s32 %s326, %s327
        %s329 = smul.addr %s328, 4
        %s330 = scalar_lea.vmem %s1, %s329
        %p331 = scmp.lt.s32.totalorder %s22, 1
        %s332 = scalar_select %p331, %s22, 1
        %p333 = scmp.lt.s32.totalorder %s23, 3
        %s334 = scalar_select %p333, %s23, 3
        %p335 = scmp.lt.s32.totalorder %s25, 0
        %s336 = scalar_select %p335, %s25, 0
        %s337 = sadd.s32 %s336, %s334
        %s338 = smul.addr %s332, 4
        %s339 = sadd.s32 %s337, %s338
        %s340 = sadd.s32 %s339, 8
        %s341 = smul.addr %s340, 4
        %s342 = scalar_lea.vmem %s2, %s341
        %p343 = scmp.lt.s32.totalorder %s22, 1
        %s344 = scalar_select %p343, %s22, 1
        %p345 = scmp.lt.s32.totalorder %s23, 3
        %s346 = scalar_select %p345, %s23, 3
        %p347 = scmp.lt.s32.totalorder %s25, 0
        %s348 = scalar_select %p347, %s25, 0
        %s349 = sadd.s32 %s348, %s346
        %s350 = smul.addr %s344, 4
        %s351 = sadd.s32 %s349, %s350
        %s352 = sadd.s32 %s351, 16
        %s353 = smul.addr %s352, 4
        %s354 = scalar_lea.vmem %s3, %s353
        %p355 = scmp.lt.s32.totalorder %s22, 1
        %s356 = scalar_select %p355, %s22, 1
        %p357 = scmp.lt.s32.totalorder %s23, 3
        %s358 = scalar_select %p357, %s23, 3
        %p359 = scmp.lt.s32.totalorder %s24, 0
        %s360 = scalar_select %p359, %s24, 0
        %s361 = sadd.s32 %s360, %s358
        %s362 = smul.addr %s356, 4
        %s363 = sadd.s32 %s361, %s362
        %s364 = smul.addr %s363, 4
        %s365 = scalar_lea.vmem %s4, %s364
        %p367 = scmp.eq.s32.totalorder %s25, 0
        // Predicated region
        $region41: #{alibi_transformer_forward.12} parent=35 // pred_check
          %p368 = pneg %p367
        $region42: #{alibi_transformer_forward.12} parent=35 // pred_check_branch
          %370 = sbr.rel (%p368) target = $region44
        $region43: #{alibi_transformer_forward.12} parent=35 // pred_region
          %vm371 = vcmask 7168
          %372 = vst.msk [vmem:[#allocation2] sm:$0xff] %vm371, -1e+30
          %373 = vst.msk [vmem:[#allocation3] sm:$0xff] %vm371, 0.0
          %vm374 = vcmask 64512
          %375 = vst.msk [vmem:[#allocation4] sm:$0xff] %vm374, 0.0
        $region44: #{alibi_transformer_forward.12} parent=35 // pred_fallthru
          _
        %s376 = smul.u32 %s24, 8
        %s377 = smul.u32 %s25, 8
        %s378 = sadd.s32 %s376, 7
        %p379 = scmp.le.s32.totalorder %s377, %s378
        // Predicated region
        $region45: #{alibi_transformer_forward.12} parent=35 // pred_check
          %p380 = pneg %p379
        $region46: #{alibi_transformer_forward.12} parent=35 // pred_check_branch
          %382 = sbr.rel (%p380) target = $region48
        $region47: #{alibi_transformer_forward.12} parent=35 // pred_region
          %s383 = sld [smem:[#allocation5 + %s23]]
          %v384 = vld [vmem:[%s330] sm:$0xf]
          %v385 = vld [vmem:[%s342] sm:$0xf]
          %vm386 = vcmask 64512
          %v388 = vsel %vm386, %v384, 0
          %v391 = vsel %vm386, %v385, 0
          %393 = vmatpush.bf16.xpose.msra.mxu0 0
          %394 = vmatpush.bf16.xpose.msra.mxu0 0
          %395 = vmatpush.bf16.xpose.msra.mxu0 0
          %396 = vmatpush.bf16.xpose.msra.mxu0 0
          %397 = vmatpush.bf16.xpose.msra.mxu0 0
          %398 = vmatpush.bf16.xpose.msra.mxu0 0
          %399 = vmatpush.bf16.xpose.msra.mxu0 0
          %400 = vmatpush.bf16.xpose.msra.mxu0 %v391
          %401 = vmatmul.bf16.gmra.mxu0 %v388
          %v402 = vpop.f32.mrf.mxu0
          %v403 = vadd.f32 0.0, %v402
          %v404 = vpop.f32.mrf.mxu0
          %405 = vdwg.mxu0
          %v406 = vmul.f32 %v403, 0.35355338
          %v407 = vlaneseq
          %v408 = vshrl.u32 %v407, 7
          %v409 = vstv %s376
          %v410 = vadd.s32 %v409, %v408
          %v411 = vlaneseq
          %v412 = vand.u32 %v411, 127
          %v413 = vstv %s377
          %v414 = vadd.s32 %v413, %v412
          %vm415 = vcmp.le.s32.totalorder %v414, %v410
          %v416 = vcvt.s32.f32 %v414
          %v417 = vstv %s383
          %v418 = vmul.f32 %v417, %v416
          %v419 = vsel %vm415, %v418, -1e+30
          %v420 = vadd.f32 %v406, %v419
          %v421 = vld [vmem:[#allocation2] sm:$0xff]
          %v422 = vsel %vm386, %v420, -inf
          %423 = vmax.xlane.f32.xlu0 %v422
          %v424 = vpop.xlane.xlu0 %423
          %v425 = vmax.f32 %v421, %v424
          %v426 = vsub.f32 %v421, %v425
          %v427 = vmul.f32 %v426, 1.442695
          %v428 = vpow.pop %v427
          %430 = vset.pattern.permute.xlu0 0
          %431 = vperm.xlu0 %430, %v425
          %v432 = vpop.permute.xlu0 %431
          %v434 = vsub.f32 %v420, %v432
          %v435 = vmul.f32 %v434, 1.442695
          %v436 = vpow.pop %v435
          %v437 = vld [vmem:[#allocation3] sm:$0xff]
          %v438 = vmul.f32 %v428, %v437
          %v439 = vsel %vm386, %v436, 0.0
          %440 = vadd.xlane.f32.xlu0 %v439
          %v441 = vpop.xlane.xlu0 %440
          %v442 = vadd.f32 %v438, %v441
          %vm443 = vcmask 7168
          %444 = vst.msk [vmem:[#allocation3] sm:$0xff] %vm443, %v442
          %v445 = vld [vmem:[#allocation4] sm:$0xff]
          %447 = vset.pattern.permute.xlu0 0
          %448 = vperm.xlu0 %447, %v428
          %v449 = vpop.permute.xlu0 %448
          %v451 = vmul.f32 %v449, %v445
          %v452 = vpack.c.bf16 %v436, %v436
          %v453 = vld [vmem:[%s354] sm:$0xf]
          %v455 = vsel %vm386, %v452, 0
          %vm457 = vcmask 1043456
          %v459 = vsel %vm457, %v453, 0
          %461 = vmatpush.bf16.msra.mxu0 0
          %462 = vmatpush.bf16.msra.mxu0 0
          %463 = vmatpush.bf16.msra.mxu0 0
          %464 = vmatpush.bf16.msra.mxu0 0
          %465 = vmatpush.bf16.msra.mxu0 0
          %466 = vmatpush.bf16.msra.mxu0 0
          %467 = vmatpush.bf16.msra.mxu0 0
          %468 = vmatpush.bf16.msra.mxu0 %v459
          %469 = vmatmul.bf16.gmra.mxu0 %v455
          %v470 = vpop.f32.mrf.mxu0
          %v471 = vadd.f32 0.0, %v470
          %v472 = vpop.f32.mrf.mxu0
          %473 = vdwg.mxu0
          %v474 = vadd.f32 %v451, %v471
          %475 = vst.msk [vmem:[#allocation4] sm:$0xff] %vm386, %v474
          %476 = vst.msk [vmem:[#allocation2] sm:$0xff] %vm443, %v425
        $region48: #{alibi_transformer_forward.12} parent=35 // pred_fallthru
          _
        // Predicated region
        $region49: #{alibi_transformer_forward.12} parent=35 // pred_check
          %p477 = pneg %p367
        $region50: #{alibi_transformer_forward.12} parent=35 // pred_check_branch
          %479 = sbr.rel (%p477) target = $region52
        $region51: #{alibi_transformer_forward.12} parent=35 // pred_region
          %v480 = vld [vmem:[#allocation4] sm:$0xff]
          %v481 = vld [vmem:[#allocation3] sm:$0xff]
          %v482 = vrcp.pop %v481
          %484 = vset.pattern.permute.xlu0 0
          %485 = vperm.xlu0 %484, %v482
          %v486 = vpop.permute.xlu0 %485
          %v488 = vmul.f32 %v480, %v486
          %v489 = vpack.c.bf16 %v488, %v488
          %vm490 = vcmask 60416
          %491 = vst.msk [vmem:[%s365] sm:$0xf] %vm490, %v489
        $region52: #{alibi_transformer_forward.12} parent=35 // pred_fallthru
          _
        %p492 = scmp.lt.s32.totalorder %s22, 1
        %s493 = scalar_select %p492, %s22, 1
        %p494 = scmp.lt.s32.totalorder %s23, 3
        %s495 = scalar_select %p494, %s23, 3
        %p496 = scmp.lt.s32.totalorder %s24, 0
        %s497 = scalar_select %p496, %s24, 0
        %s498 = sadd.s32 %s497, %s495
        %s499 = smul.addr %s493, 4
        %s500 = sadd.s32 %s498, %s499
        %s501 = smul.addr %s500, 4
        %s502 = scalar_lea.vmem %s4, %s501
        // Predicated region
        $region53: #{alibi_transformer_forward.12} parent=35 // pred_check
          %p503 = pneg %p175
        $region54: #{alibi_transformer_forward.12} parent=35 // pred_check_branch
          %505 = sbr.rel (%p503) target = $region56
        $region55: #{alibi_transformer_forward.12} parent=35 // pred_region
          _
        $region56: #{alibi_transformer_forward.12} parent=35 // pred_fallthru
          _
      $region36: #{alibi_transformer_forward.12} parent=5 // pred_fallthru
        _
      %p506 = scmp.le.s32.totalorder 2, %s11
      // Predicated region
      $region57: #{alibi_transformer_forward.12} parent=5 // pred_check
        %p507 = pneg %p506
      $region58: #{alibi_transformer_forward.12} parent=5 // pred_check_branch
        %509 = sbr.rel (%p507) target = $region60
      $region59: #{alibi_transformer_forward.12} parent=5 // pred_region
        %s510 = ssub.s32 %s11, 2
        // Predicated region
        $region61: #{alibi_transformer_forward.12} parent=59 // pred_check
          %p511 = pneg %p181
        $region62: #{alibi_transformer_forward.12} parent=59 // pred_check_branch
          %513 = sbr.rel (%p511) target = $region64
        $region63: #{alibi_transformer_forward.12} parent=59 // pred_region
          %p514 = scmp.lt.s32.totalorder %s26, 1
          %s515 = scalar_select %p514, %s26, 1
          %p516 = scmp.lt.s32.totalorder %s27, 3
          %s517 = scalar_select %p516, %s27, 3
          %p518 = scmp.lt.s32.totalorder %s28, 0
          %s519 = scalar_select %p518, %s28, 0
          %s520 = sadd.s32 %s519, %s517
          %s521 = smul.addr %s515, 4
          %s522 = sadd.s32 %s520, %s521
          %s523 = smul.addr %s522, 4
          %s524 = scalar_lea.vmem %s4, %s523
        $region64: #{alibi_transformer_forward.12} parent=59 // pred_fallthru
          _
      $region60: #{alibi_transformer_forward.12} parent=5 // pred_fallthru
        _
    $region6: #{alibi_transformer_forward.12} parent=1 // loop_footer
      %s15 = sadd.s32 1, %s11
    $region7: #{alibi_transformer_forward.12} parent=1 // loop_footer_branch
      %10 = sbr.rel target = $region3
    $region8: #{alibi_transformer_forward.12} parent=1 // loop_exit
      _
    %525 = vsyncpa [#allocation6], 1
    %s526 = scalar_lea.sflag [#allocation6], 1
    %527 = vsyncpa %s526, 1

// kernel: alibi_transformer_forward.11
$region0: #{alibi_transformer_forward.11}
  #allocation0 [shape = 'u32[]', space=smem, size = 0x4, offset = 0x4, fixed_abs, tag = 'smem constant byte address 0x4 - core index']
  #allocation1 [shape = 'u32[72,128]{1,0:T(1,128)}', space=vmem, size = 0x9000, scoped, tag = 'internal scratch']
  #allocation2 [shape = 'f32[16,96]{1,0:T(8,128)}', space=vmem, size = 0x2000, scoped, tag = 'scratch operand']
  %s0 = inlined_call_operand.vmem [shape: f32[16,32], index: 0, kind: input, shape index: {}]
  %s1 = inlined_call_operand.vmem [shape: bf16[32,96], index: 1, kind: input, shape index: {}]
  %s2 = inlined_call_operand.vmem [shape: f32[1,96], index: 2, kind: input, shape index: {}]
  %s3 = inlined_call_operand.vmem [shape: bf16[16,96], index: 3, kind: output, shape index: {}]
  %s4 = sld [smem:[#allocation0]]
  $region30: #{alibi_transformer_forward.11} parent=0
    _
  %s6 = ssub.s32 1, %s4
  %s7 = scalar_select 0, %s6, %s4
  // Predicated region
  $region2: #{alibi_transformer_forward.11} parent=0 // pred_check
    _
  $region3: #{alibi_transformer_forward.11} parent=0 // pred_check_branch
    %9 = sbr.rel (0) target = $region5
  $region4: #{alibi_transformer_forward.11} parent=0 // pred_region
    _
  $region5: #{alibi_transformer_forward.11} parent=0 // pred_fallthru
    _
  // Predicated region
  $region6: #{alibi_transformer_forward.11} parent=0 // pred_check
    _
  $region7: #{alibi_transformer_forward.11} parent=0 // pred_check_branch
    %11 = sbr.rel (0) target = $region9
  $region8: #{alibi_transformer_forward.11} parent=0 // pred_region
    _
  $region9: #{alibi_transformer_forward.11} parent=0 // pred_fallthru
    _
  // Predicated region
  $region10: #{alibi_transformer_forward.11} parent=0 // pred_check
    _
  $region11: #{alibi_transformer_forward.11} parent=0 // pred_check_branch
    %13 = sbr.rel (0) target = $region13
  $region12: #{alibi_transformer_forward.11} parent=0 // pred_region
    _
  $region13: #{alibi_transformer_forward.11} parent=0 // pred_fallthru
    _
  %p15 = scmp.eq.s32.totalorder 0, 0
  // Predicated region
  $region14: #{alibi_transformer_forward.11} parent=0 // pred_check
    %p16 = pneg %p15
  $region15: #{alibi_transformer_forward.11} parent=0 // pred_check_branch
    %18 = sbr.rel (%p16) target = $region17
  $region16: #{alibi_transformer_forward.11} parent=0 // pred_region
    %vm19 = vcmask 785408
    %20 = vst.msk [vmem:[#allocation2] sm:$0xff] %vm19, 0.0
    %21 = vst.msk [vmem:[#allocation2 + $0x8] sm:$0xff] %vm19, 0.0
  $region17: #{alibi_transformer_forward.11} parent=0 // pred_fallthru
    _
  %v22 = vld [vmem:[%s0] sm:$0xff]
  %v23 = vld [vmem:[%s0 + $0x8] sm:$0xff]
  %v24 = vpack.c.bf16 %v23, %v22
  %v25 = vld [vmem:[%s1] sm:$0xf]
  %v26 = vld [vmem:[%s1 + $0x4] sm:$0xf]
  %v27 = vld [vmem:[%s1 + $0x8] sm:$0xf]
  %v28 = vld [vmem:[%s1 + $0xc] sm:$0xf]
  %v29 = vld [vmem:[#allocation2] sm:$0xff]
  %v30 = vld [vmem:[#allocation2 + $0x8] sm:$0xff]
  %v35 = vunpack.c.l.b16 %v25
  %v36 = vunpack.c.l.b16 %v26
  %v37 = vunpack.c.l.b16 %v27
  %v38 = vunpack.c.l.b16 %v28
  %v39 = vpack.c.b16 %v36, %v35
  %v40 = vpack.c.b16 %v38, %v37
  %vm43 = vcmask 261120
  %v45 = vsel %vm43, %v24, 0
  %47 = vmatpush.bf16.msra.mxu0 0
  %48 = vmatpush.bf16.msra.mxu0 0
  %49 = vmatpush.bf16.msra.mxu0 0
  %50 = vmatpush.bf16.msra.mxu0 0
  %51 = vmatpush.bf16.msra.mxu0 0
  %52 = vmatpush.bf16.msra.mxu0 0
  %53 = vmatpush.bf16.msra.mxu0 %v40
  %54 = vmatpush.bf16.msra.mxu0 %v39
  %55 = vmatmul.bf16.gmra.mxu0 %v45
  %v56 = vpop.f32.mrf.mxu0
  %v57 = vadd.f32 0.0, %v56
  %v58 = vpop.f32.mrf.mxu0
  %v59 = vadd.f32 0.0, %v58
  %60 = vdwg.mxu0
  %v61 = vadd.f32 %v29, %v57
  %v62 = vadd.f32 %v30, %v59
  %vm63 = vcmask 785408
  %64 = vst.msk [vmem:[#allocation2] sm:$0xff] %vm63, %v61
  %65 = vst.msk [vmem:[#allocation2 + $0x8] sm:$0xff] %vm63, %v62
  // Predicated region
  $region18: #{alibi_transformer_forward.11} parent=0 // pred_check
    %p66 = pneg %p15
  $region19: #{alibi_transformer_forward.11} parent=0 // pred_check_branch
    %68 = sbr.rel (%p66) target = $region21
  $region20: #{alibi_transformer_forward.11} parent=0 // pred_region
    %v69 = vld [vmem:[#allocation2] sm:$0xff]
    %v70 = vld [vmem:[#allocation2 + $0x8] sm:$0xff]
    %v71 = vld [vmem:[%s2] sm:$0x1]
    %v73 = vperm.slane %v71, 0
    %v75 = vadd.f32 %v69, %v73
    %v76 = vadd.f32 %v70, %v73
    %v77 = vpack.c.bf16 %v75, %v75
    %v78 = vpack.c.bf16 %v76, %v76
    %vm79 = vcmask 781312
    %80 = vst.msk [vmem:[%s3] sm:$0xf] %vm79, %v77
    %81 = vst.msk [vmem:[%s3 + $0x4] sm:$0xf] %vm79, %v78
  $region21: #{alibi_transformer_forward.11} parent=0 // pred_fallthru
    _
  // Predicated region
  $region22: #{alibi_transformer_forward.11} parent=0 // pred_check
    _
  $region23: #{alibi_transformer_forward.11} parent=0 // pred_check_branch
    %83 = sbr.rel (0) target = $region25
  $region24: #{alibi_transformer_forward.11} parent=0 // pred_region
    _
  $region25: #{alibi_transformer_forward.11} parent=0 // pred_fallthru
    _
  // Predicated region
  $region26: #{alibi_transformer_forward.11} parent=0 // pred_check
    _
  $region27: #{alibi_transformer_forward.11} parent=0 // pred_check_branch
    %85 = sbr.rel (0) target = $region29
  $region28: #{alibi_transformer_forward.11} parent=0 // pred_region
    _
  $region29: #{alibi_transformer_forward.11} parent=0 // pred_fallthru
    _

// kernel: alibi_transformer_forward.14
$region0: #{alibi_transformer_forward.14}
  #allocation0 [shape = 'u32[]', space=smem, size = 0x4, offset = 0x4, fixed_abs, tag = 'smem constant byte address 0x4 - core index']
  #allocation1 [shape = 'u32[72,128]{1,0:T(1,128)}', space=vmem, size = 0x9000, scoped, tag = 'internal scratch']
  #allocation2 [shape = 'f32[16,64]{1,0:T(8,128)}', space=vmem, size = 0x2000, scoped, tag = 'scratch operand']
  %s0 = inlined_call_operand.vmem [shape: f32[16,32], index: 0, kind: input, shape index: {}]
  %s1 = inlined_call_operand.vmem [shape: bf16[32,64], index: 1, kind: input, shape index: {}]
  %s2 = inlined_call_operand.vmem [shape: f32[1,64], index: 2, kind: input, shape index: {}]
  %s3 = inlined_call_operand.vmem [shape: bf16[16,64], index: 3, kind: output, shape index: {}]
  %s4 = sld [smem:[#allocation0]]
  $region30: #{alibi_transformer_forward.14} parent=0
    _
  %s6 = ssub.s32 1, %s4
  %s7 = scalar_select 0, %s6, %s4
  // Predicated region
  $region2: #{alibi_transformer_forward.14} parent=0 // pred_check
    _
  $region3: #{alibi_transformer_forward.14} parent=0 // pred_check_branch
    %9 = sbr.rel (0) target = $region5
  $region4: #{alibi_transformer_forward.14} parent=0 // pred_region
    _
  $region5: #{alibi_transformer_forward.14} parent=0 // pred_fallthru
    _
  // Predicated region
  $region6: #{alibi_transformer_forward.14} parent=0 // pred_check
    _
  $region7: #{alibi_transformer_forward.14} parent=0 // pred_check_branch
    %11 = sbr.rel (0) target = $region9
  $region8: #{alibi_transformer_forward.14} parent=0 // pred_region
    _
  $region9: #{alibi_transformer_forward.14} parent=0 // pred_fallthru
    _
  // Predicated region
  $region10: #{alibi_transformer_forward.14} parent=0 // pred_check
    _
  $region11: #{alibi_transformer_forward.14} parent=0 // pred_check_branch
    %13 = sbr.rel (0) target = $region13
  $region12: #{alibi_transformer_forward.14} parent=0 // pred_region
    _
  $region13: #{alibi_transformer_forward.14} parent=0 // pred_fallthru
    _
  %p15 = scmp.eq.s32.totalorder 0, 0
  // Predicated region
  $region14: #{alibi_transformer_forward.14} parent=0 // pred_check
    %p16 = pneg %p15
  $region15: #{alibi_transformer_forward.14} parent=0 // pred_check_branch
    %18 = sbr.rel (%p16) target = $region17
  $region16: #{alibi_transformer_forward.14} parent=0 // pred_region
    %vm19 = vcmask 523264
    %20 = vst.msk [vmem:[#allocation2] sm:$0xff] %vm19, 0.0
    %21 = vst.msk [vmem:[#allocation2 + $0x8] sm:$0xff] %vm19, 0.0
  $region17: #{alibi_transformer_forward.14} parent=0 // pred_fallthru
    _
  %v22 = vld [vmem:[%s0] sm:$0xff]
  %v23 = vld [vmem:[%s0 + $0x8] sm:$0xff]
  %v24 = vpack.c.bf16 %v23, %v22
  %v25 = vld [vmem:[%s1] sm:$0xf]
  %v26 = vld [vmem:[%s1 + $0x4] sm:$0xf]
  %v27 = vld [vmem:[%s1 + $0x8] sm:$0xf]
  %v28 = vld [vmem:[%s1 + $0xc] sm:$0xf]
  %v29 = vld [vmem:[#allocation2] sm:$0xff]
  %v30 = vld [vmem:[#allocation2 + $0x8] sm:$0xff]
  %v35 = vunpack.c.l.b16 %v25
  %v36 = vunpack.c.l.b16 %v26
  %v37 = vunpack.c.l.b16 %v27
  %v38 = vunpack.c.l.b16 %v28
  %v39 = vpack.c.b16 %v36, %v35
  %v40 = vpack.c.b16 %v38, %v37
  %vm43 = vcmask 261120
  %v45 = vsel %vm43, %v24, 0
  %47 = vmatpush.bf16.msra.mxu0 0
  %48 = vmatpush.bf16.msra.mxu0 0
  %49 = vmatpush.bf16.msra.mxu0 0
  %50 = vmatpush.bf16.msra.mxu0 0
  %51 = vmatpush.bf16.msra.mxu0 0
  %52 = vmatpush.bf16.msra.mxu0 0
  %53 = vmatpush.bf16.msra.mxu0 %v40
  %54 = vmatpush.bf16.msra.mxu0 %v39
  %55 = vmatmul.bf16.gmra.mxu0 %v45
  %v56 = vpop.f32.mrf.mxu0
  %v57 = vadd.f32 0.0, %v56
  %v58 = vpop.f32.mrf.mxu0
  %v59 = vadd.f32 0.0, %v58
  %60 = vdwg.mxu0
  %v61 = vadd.f32 %v29, %v57
  %v62 = vadd.f32 %v30, %v59
  %vm63 = vcmask 523264
  %64 = vst.msk [vmem:[#allocation2] sm:$0xff] %vm63, %v61
  %65 = vst.msk [vmem:[#allocation2 + $0x8] sm:$0xff] %vm63, %v62
  // Predicated region
  $region18: #{alibi_transformer_forward.14} parent=0 // pred_check
    %p66 = pneg %p15
  $region19: #{alibi_transformer_forward.14} parent=0 // pred_check_branch
    %68 = sbr.rel (%p66) target = $region21
  $region20: #{alibi_transformer_forward.14} parent=0 // pred_region
    %v69 = vld [vmem:[#allocation2] sm:$0xff]
    %v70 = vld [vmem:[#allocation2 + $0x8] sm:$0xff]
    %v71 = vld [vmem:[%s2] sm:$0x1]
    %v73 = vperm.slane %v71, 0
    %v75 = vadd.f32 %v69, %v73
    %v76 = vadd.f32 %v70, %v73
    %v77 = vmul.f32 %v75, %v75
    %v78 = vmul.f32 %v76, %v76
    %v79 = vmul.f32 %v75, %v77
    %v80 = vmul.f32 %v76, %v78
    %v81 = vmul.f32 %v79, 0.044715
    %v82 = vmul.f32 %v80, 0.044715
    %v83 = vadd.f32 %v75, %v81
    %v84 = vadd.f32 %v76, %v82
    %v85 = vmul.f32 %v83, 0.7978846
    %v86 = vmul.f32 %v84, 0.7978846
    %v87 = vtanh.pop %v85
    %v88 = vtanh.pop %v86
    %v89 = vadd.f32 %v87, 1.0
    %v90 = vadd.f32 %v88, 1.0
    %v91 = vmul.f32 %v89, 0.5
    %v92 = vmul.f32 %v90, 0.5
    %v93 = vmul.f32 %v75, %v91
    %v94 = vmul.f32 %v76, %v92
    %v95 = vpack.c.bf16 %v93, %v93
    %v96 = vpack.c.bf16 %v94, %v94
    %vm97 = vcmask 519168
    %98 = vst.msk [vmem:[%s3] sm:$0xf] %vm97, %v95
    %99 = vst.msk [vmem:[%s3 + $0x4] sm:$0xf] %vm97, %v96
  $region21: #{alibi_transformer_forward.14} parent=0 // pred_fallthru
    _
  // Predicated region
  $region22: #{alibi_transformer_forward.14} parent=0 // pred_check
    _
  $region23: #{alibi_transformer_forward.14} parent=0 // pred_check_branch
    %101 = sbr.rel (0) target = $region25
  $region24: #{alibi_transformer_forward.14} parent=0 // pred_region
    _
  $region25: #{alibi_transformer_forward.14} parent=0 // pred_fallthru
    _
  // Predicated region
  $region26: #{alibi_transformer_forward.14} parent=0 // pred_check
    _
  $region27: #{alibi_transformer_forward.14} parent=0 // pred_check_branch
    %103 = sbr.rel (0) target = $region29
  $region28: #{alibi_transformer_forward.14} parent=0 // pred_region
    _
  $region29: #{alibi_transformer_forward.14} parent=0 // pred_fallthru
    _

// kernel: alibi_transformer_forward.13
$region0: #{alibi_transformer_forward.13}
  #allocation0 [shape = 'u32[]', space=smem, size = 0x4, offset = 0x4, fixed_abs, tag = 'smem constant byte address 0x4 - core index']
  #allocation1 [shape = 'u32[72,128]{1,0:T(1,128)}', space=vmem, size = 0x9000, scoped, tag = 'internal scratch']
  #allocation2 [shape = 'f32[16,32]{1,0:T(8,128)}', space=vmem, size = 0x2000, scoped, tag = 'scratch operand']
  %s0 = inlined_call_operand.vmem [shape: bf16[16,32], index: 0, kind: input, shape index: {}]
  %s1 = inlined_call_operand.vmem [shape: bf16[32,32], index: 1, kind: input, shape index: {}]
  %s2 = inlined_call_operand.vmem [shape: f32[1,32], index: 2, kind: input, shape index: {}]
  %s3 = inlined_call_operand.vmem [shape: f32[16,32], index: 3, kind: input, shape index: {}]
  %s4 = inlined_call_operand.vmem [shape: f32[1,32], index: 4, kind: input, shape index: {}]
  %s5 = inlined_call_operand.vmem [shape: f32[1,32], index: 5, kind: input, shape index: {}]
  %s6 = inlined_call_operand.vmem [shape: f32[16,32], index: 6, kind: output, shape index: {}]
  %s7 = sld [smem:[#allocation0]]
  $region42: #{alibi_transformer_forward.13} parent=0
    _
  %s9 = ssub.s32 1, %s7
  %s10 = scalar_select 0, %s9, %s7
  // Predicated region
  $region2: #{alibi_transformer_forward.13} parent=0 // pred_check
    _
  $region3: #{alibi_transformer_forward.13} parent=0 // pred_check_branch
    %12 = sbr.rel (0) target = $region5
  $region4: #{alibi_transformer_forward.13} parent=0 // pred_region
    _
  $region5: #{alibi_transformer_forward.13} parent=0 // pred_fallthru
    _
  // Predicated region
  $region6: #{alibi_transformer_forward.13} parent=0 // pred_check
    _
  $region7: #{alibi_transformer_forward.13} parent=0 // pred_check_branch
    %14 = sbr.rel (0) target = $region9
  $region8: #{alibi_transformer_forward.13} parent=0 // pred_region
    _
  $region9: #{alibi_transformer_forward.13} parent=0 // pred_fallthru
    _
  // Predicated region
  $region10: #{alibi_transformer_forward.13} parent=0 // pred_check
    _
  $region11: #{alibi_transformer_forward.13} parent=0 // pred_check_branch
    %16 = sbr.rel (0) target = $region13
  $region12: #{alibi_transformer_forward.13} parent=0 // pred_region
    _
  $region13: #{alibi_transformer_forward.13} parent=0 // pred_fallthru
    _
  // Predicated region
  $region14: #{alibi_transformer_forward.13} parent=0 // pred_check
    _
  $region15: #{alibi_transformer_forward.13} parent=0 // pred_check_branch
    %18 = sbr.rel (0) target = $region17
  $region16: #{alibi_transformer_forward.13} parent=0 // pred_region
    _
  $region17: #{alibi_transformer_forward.13} parent=0 // pred_fallthru
    _
  // Predicated region
  $region18: #{alibi_transformer_forward.13} parent=0 // pred_check
    _
  $region19: #{alibi_transformer_forward.13} parent=0 // pred_check_branch
    %20 = sbr.rel (0) target = $region21
  $region20: #{alibi_transformer_forward.13} parent=0 // pred_region
    _
  $region21: #{alibi_transformer_forward.13} parent=0 // pred_fallthru
    _
  // Predicated region
  $region22: #{alibi_transformer_forward.13} parent=0 // pred_check
    _
  $region23: #{alibi_transformer_forward.13} parent=0 // pred_check_branch
    %22 = sbr.rel (0) target = $region25
  $region24: #{alibi_transformer_forward.13} parent=0 // pred_region
    _
  $region25: #{alibi_transformer_forward.13} parent=0 // pred_fallthru
    _
  %p24 = scmp.eq.s32.totalorder 0, 0
  // Predicated region
  $region26: #{alibi_transformer_forward.13} parent=0 // pred_check
    %p25 = pneg %p24
  $region27: #{alibi_transformer_forward.13} parent=0 // pred_check_branch
    %27 = sbr.rel (%p25) target = $region29
  $region28: #{alibi_transformer_forward.13} parent=0 // pred_region
    %vm28 = vcmask 261120
    %29 = vst.msk [vmem:[#allocation2] sm:$0xff] %vm28, 0.0
    %30 = vst.msk [vmem:[#allocation2 + $0x8] sm:$0xff] %vm28, 0.0
  $region29: #{alibi_transformer_forward.13} parent=0 // pred_fallthru
    _
  %v31 = vld [vmem:[%s0] sm:$0xf]
  %v32 = vld [vmem:[%s0 + $0x4] sm:$0xf]
  %v33 = vld [vmem:[%s1] sm:$0xf]
  %v34 = vld [vmem:[%s1 + $0x4] sm:$0xf]
  %v35 = vld [vmem:[%s1 + $0x8] sm:$0xf]
  %v36 = vld [vmem:[%s1 + $0xc] sm:$0xf]
  %v37 = vld [vmem:[#allocation2] sm:$0xff]
  %v38 = vld [vmem:[#allocation2 + $0x8] sm:$0xff]
  %v41 = vunpack.c.l.b16 %v31
  %v42 = vunpack.c.l.b16 %v32
  %v43 = vpack.c.b16 %v42, %v41
  %v48 = vunpack.c.l.b16 %v33
  %v49 = vunpack.c.l.b16 %v34
  %v50 = vunpack.c.l.b16 %v35
  %v51 = vunpack.c.l.b16 %v36
  %v52 = vpack.c.b16 %v49, %v48
  %v53 = vpack.c.b16 %v51, %v50
  %vm56 = vcmask 261120
  %v58 = vsel %vm56, %v43, 0
  %60 = vmatpush.bf16.msra.mxu0 0
  %61 = vmatpush.bf16.msra.mxu0 0
  %62 = vmatpush.bf16.msra.mxu0 0
  %63 = vmatpush.bf16.msra.mxu0 0
  %64 = vmatpush.bf16.msra.mxu0 0
  %65 = vmatpush.bf16.msra.mxu0 0
  %66 = vmatpush.bf16.msra.mxu0 %v53
  %67 = vmatpush.bf16.msra.mxu0 %v52
  %68 = vmatmul.bf16.gmra.mxu0 %v58
  %v69 = vpop.f32.mrf.mxu0
  %v70 = vadd.f32 0.0, %v69
  %v71 = vpop.f32.mrf.mxu0
  %v72 = vadd.f32 0.0, %v71
  %73 = vdwg.mxu0
  %v74 = vadd.f32 %v37, %v70
  %v75 = vadd.f32 %v38, %v72
  %76 = vst.msk [vmem:[#allocation2] sm:$0xff] %vm56, %v74
  %77 = vst.msk [vmem:[#allocation2 + $0x8] sm:$0xff] %vm56, %v75
  // Predicated region
  $region30: #{alibi_transformer_forward.13} parent=0 // pred_check
    %p78 = pneg %p24
  $region31: #{alibi_transformer_forward.13} parent=0 // pred_check_branch
    %80 = sbr.rel (%p78) target = $region33
  $region32: #{alibi_transformer_forward.13} parent=0 // pred_region
    %v81 = vld [vmem:[#allocation2] sm:$0xff]
    %v82 = vld [vmem:[#allocation2 + $0x8] sm:$0xff]
    %v83 = vld [vmem:[%s2] sm:$0x1]
    %v85 = vperm.slane %v83, 0
    %v87 = vadd.f32 %v81, %v85
    %v88 = vadd.f32 %v82, %v85
    %v89 = vld [vmem:[%s3] sm:$0xff]
    %v90 = vld [vmem:[%s3 + $0x8] sm:$0xff]
    %v91 = vadd.f32 %v87, %v89
    %v92 = vadd.f32 %v88, %v90
    %v93 = vsel %vm56, %v91, 0.0
    %94 = vadd.xlane.f32.xlu0 %v93
    %v95 = vpop.xlane.xlu0 %94
    %v96 = vsel %vm56, %v92, 0.0
    %97 = vadd.xlane.f32.xlu0 %v96
    %v98 = vpop.xlane.xlu0 %97
    %v99 = vrcp.pop 32.0
    %v100 = vmul.f32 32.0, %v99
    %v101 = vsub.f32 1.0, %v100
    %v102 = vmul.f32 %v99, %v101
    %v103 = vadd.f32 %v99, %v102
    %vm104 = vweird.f32 %v99
    %v105 = vsel %vm104, %v99, %v103
    %v106 = vmul.f32 %v95, %v105
    %v107 = vmul.f32 %v98, %v105
    %v108 = vsub.f32 %v91, %v106
    %v109 = vsub.f32 %v92, %v107
    %v110 = vmul.f32 %v108, %v108
    %v111 = vmul.f32 %v109, %v109
    %v112 = vsel %vm56, %v110, 0.0
    %113 = vadd.xlane.f32.xlu0 %v112
    %v114 = vpop.xlane.xlu0 %113
    %v115 = vsel %vm56, %v111, 0.0
    %116 = vadd.xlane.f32.xlu0 %v115
    %v117 = vpop.xlane.xlu0 %116
    %v118 = vmul.f32 %v114, %v105
    %v119 = vmul.f32 %v117, %v105
    %v120 = vadd.f32 %v118, 1e-05
    %v121 = vadd.f32 %v119, 1e-05
    %v122 = vrsqrt.pop %v120
    %v123 = vmul.f32 %v122, %v120
    %v124 = vmul.f32 %v123, %v122
    %v125 = vmul.f32 0.5, %v124
    %v126 = vsub.f32 1.5, %v125
    %v127 = vmul.f32 %v122, %v126
    %vm128 = vweird.f32 %v120
    %vm129 = vweird.f32 %v122
    %vm130 = vmor %vm128, %vm129
    %v131 = vsel %vm130, %v122, %v127
    %v132 = vrsqrt.pop %v121
    %v133 = vmul.f32 %v132, %v121
    %v134 = vmul.f32 %v133, %v132
    %v135 = vmul.f32 0.5, %v134
    %v136 = vsub.f32 1.5, %v135
    %v137 = vmul.f32 %v132, %v136
    %vm138 = vweird.f32 %v121
    %vm139 = vweird.f32 %v132
    %vm140 = vmor %vm138, %vm139
    %v141 = vsel %vm140, %v132, %v137
    %v142 = vmul.f32 %v108, %v131
    %v143 = vmul.f32 %v109, %v141
    %v144 = vld [vmem:[%s4] sm:$0x1]
    %v146 = vperm.slane %v144, 0
    %v148 = vmul.f32 %v142, %v146
    %v149 = vmul.f32 %v143, %v146
    %v150 = vld [vmem:[%s5] sm:$0x1]
    %v152 = vperm.slane %v150, 0
    %v154 = vadd.f32 %v148, %v152
    %v155 = vadd.f32 %v149, %v152
    %156 = vst.msk [vmem:[%s6] sm:$0xff] %vm56, %v154
    %157 = vst.msk [vmem:[%s6 + $0x8] sm:$0xff] %vm56, %v155
  $region33: #{alibi_transformer_forward.13} parent=0 // pred_fallthru
    _
  // Predicated region
  $region34: #{alibi_transformer_forward.13} parent=0 // pred_check
    _
  $region35: #{alibi_transformer_forward.13} parent=0 // pred_check_branch
    %159 = sbr.rel (0) target = $region37
  $region36: #{alibi_transformer_forward.13} parent=0 // pred_region
    _
  $region37: #{alibi_transformer_forward.13} parent=0 // pred_fallthru
    _
  // Predicated region
  $region38: #{alibi_transformer_forward.13} parent=0 // pred_check
    _
  $region39: #{alibi_transformer_forward.13} parent=0 // pred_check_branch
    %161 = sbr.rel (0) target = $region41
  $region40: #{alibi_transformer_forward.13} parent=0 // pred_region
    _
  $region41: #{alibi_transformer_forward.13} parent=0 // pred_fallthru
    _

// kernel: alibi_transformer_forward.15
$region0: #{alibi_transformer_forward.15}
  #allocation0 [shape = 'u32[]', space=smem, size = 0x4, offset = 0x4, fixed_abs, tag = 'smem constant byte address 0x4 - core index']
  #allocation1 [shape = 'u32[72,128]{1,0:T(1,128)}', space=vmem, size = 0x9000, scoped, tag = 'internal scratch']
  #allocation2 [shape = 'f32[16,32]{1,0:T(8,128)}', space=vmem, size = 0x2000, scoped, tag = 'scratch operand']
  %s0 = inlined_call_operand.vmem [shape: bf16[16,64], index: 0, kind: input, shape index: {}]
  %s1 = inlined_call_operand.vmem [shape: bf16[64,32], index: 1, kind: input, shape index: {}]
  %s2 = inlined_call_operand.vmem [shape: f32[1,32], index: 2, kind: input, shape index: {}]
  %s3 = inlined_call_operand.vmem [shape: f32[16,32], index: 3, kind: input, shape index: {}]
  %s4 = inlined_call_operand.vmem [shape: f32[1,32], index: 4, kind: input, shape index: {}]
  %s5 = inlined_call_operand.vmem [shape: f32[1,32], index: 5, kind: input, shape index: {}]
  %s6 = inlined_call_operand.vmem [shape: f32[16,32], index: 6, kind: output, shape index: {}]
  %s7 = sld [smem:[#allocation0]]
  $region42: #{alibi_transformer_forward.15} parent=0
    _
  %s9 = ssub.s32 1, %s7
  %s10 = scalar_select 0, %s9, %s7
  // Predicated region
  $region2: #{alibi_transformer_forward.15} parent=0 // pred_check
    _
  $region3: #{alibi_transformer_forward.15} parent=0 // pred_check_branch
    %12 = sbr.rel (0) target = $region5
  $region4: #{alibi_transformer_forward.15} parent=0 // pred_region
    _
  $region5: #{alibi_transformer_forward.15} parent=0 // pred_fallthru
    _
  // Predicated region
  $region6: #{alibi_transformer_forward.15} parent=0 // pred_check
    _
  $region7: #{alibi_transformer_forward.15} parent=0 // pred_check_branch
    %14 = sbr.rel (0) target = $region9
  $region8: #{alibi_transformer_forward.15} parent=0 // pred_region
    _
  $region9: #{alibi_transformer_forward.15} parent=0 // pred_fallthru
    _
  // Predicated region
  $region10: #{alibi_transformer_forward.15} parent=0 // pred_check
    _
  $region11: #{alibi_transformer_forward.15} parent=0 // pred_check_branch
    %16 = sbr.rel (0) target = $region13
  $region12: #{alibi_transformer_forward.15} parent=0 // pred_region
    _
  $region13: #{alibi_transformer_forward.15} parent=0 // pred_fallthru
    _
  // Predicated region
  $region14: #{alibi_transformer_forward.15} parent=0 // pred_check
    _
  $region15: #{alibi_transformer_forward.15} parent=0 // pred_check_branch
    %18 = sbr.rel (0) target = $region17
  $region16: #{alibi_transformer_forward.15} parent=0 // pred_region
    _
  $region17: #{alibi_transformer_forward.15} parent=0 // pred_fallthru
    _
  // Predicated region
  $region18: #{alibi_transformer_forward.15} parent=0 // pred_check
    _
  $region19: #{alibi_transformer_forward.15} parent=0 // pred_check_branch
    %20 = sbr.rel (0) target = $region21
  $region20: #{alibi_transformer_forward.15} parent=0 // pred_region
    _
  $region21: #{alibi_transformer_forward.15} parent=0 // pred_fallthru
    _
  // Predicated region
  $region22: #{alibi_transformer_forward.15} parent=0 // pred_check
    _
  $region23: #{alibi_transformer_forward.15} parent=0 // pred_check_branch
    %22 = sbr.rel (0) target = $region25
  $region24: #{alibi_transformer_forward.15} parent=0 // pred_region
    _
  $region25: #{alibi_transformer_forward.15} parent=0 // pred_fallthru
    _
  %p24 = scmp.eq.s32.totalorder 0, 0
  // Predicated region
  $region26: #{alibi_transformer_forward.15} parent=0 // pred_check
    %p25 = pneg %p24
  $region27: #{alibi_transformer_forward.15} parent=0 // pred_check_branch
    %27 = sbr.rel (%p25) target = $region29
  $region28: #{alibi_transformer_forward.15} parent=0 // pred_region
    %vm28 = vcmask 261120
    %29 = vst.msk [vmem:[#allocation2] sm:$0xff] %vm28, 0.0
    %30 = vst.msk [vmem:[#allocation2 + $0x8] sm:$0xff] %vm28, 0.0
  $region29: #{alibi_transformer_forward.15} parent=0 // pred_fallthru
    _
  %v31 = vld [vmem:[%s0] sm:$0xf]
  %v32 = vld [vmem:[%s0 + $0x4] sm:$0xf]
  %v33 = vld [vmem:[%s1] sm:$0xf]
  %v34 = vld [vmem:[%s1 + $0x4] sm:$0xf]
  %v35 = vld [vmem:[%s1 + $0x8] sm:$0xf]
  %v36 = vld [vmem:[%s1 + $0xc] sm:$0xf]
  %v37 = vld [vmem:[%s1 + $0x10] sm:$0xf]
  %v38 = vld [vmem:[%s1 + $0x14] sm:$0xf]
  %v39 = vld [vmem:[%s1 + $0x18] sm:$0xf]
  %v40 = vld [vmem:[%s1 + $0x1c] sm:$0xf]
  %v41 = vld [vmem:[#allocation2] sm:$0xff]
  %v42 = vld [vmem:[#allocation2 + $0x8] sm:$0xff]
  %v45 = vunpack.c.l.b16 %v31
  %v46 = vunpack.c.l.b16 %v32
  %v47 = vpack.c.b16 %v46, %v45
  %v56 = vunpack.c.l.b16 %v33
  %v57 = vunpack.c.l.b16 %v34
  %v58 = vunpack.c.l.b16 %v35
  %v59 = vunpack.c.l.b16 %v36
  %v60 = vunpack.c.l.b16 %v37
  %v61 = vunpack.c.l.b16 %v38
  %v62 = vunpack.c.l.b16 %v39
  %v63 = vunpack.c.l.b16 %v40
  %v64 = vpack.c.b16 %v57, %v56
  %v65 = vpack.c.b16 %v59, %v58
  %v66 = vpack.c.b16 %v61, %v60
  %v67 = vpack.c.b16 %v63, %v62
  %vm72 = vcmask 523264
  %v74 = vsel %vm72, %v47, 0
  %76 = vmatpush.bf16.msra.mxu0 0
  %77 = vmatpush.bf16.msra.mxu0 0
  %78 = vmatpush.bf16.msra.mxu0 0
  %79 = vmatpush.bf16.msra.mxu0 0
  %80 = vmatpush.bf16.msra.mxu0 %v67
  %81 = vmatpush.bf16.msra.mxu0 %v66
  %82 = vmatpush.bf16.msra.mxu0 %v65
  %83 = vmatpush.bf16.msra.mxu0 %v64
  %84 = vmatmul.bf16.gmra.mxu0 %v74
  %v85 = vpop.f32.mrf.mxu0
  %v86 = vadd.f32 0.0, %v85
  %v87 = vpop.f32.mrf.mxu0
  %v88 = vadd.f32 0.0, %v87
  %89 = vdwg.mxu0
  %v90 = vadd.f32 %v41, %v86
  %v91 = vadd.f32 %v42, %v88
  %vm92 = vcmask 261120
  %93 = vst.msk [vmem:[#allocation2] sm:$0xff] %vm92, %v90
  %94 = vst.msk [vmem:[#allocation2 + $0x8] sm:$0xff] %vm92, %v91
  // Predicated region
  $region30: #{alibi_transformer_forward.15} parent=0 // pred_check
    %p95 = pneg %p24
  $region31: #{alibi_transformer_forward.15} parent=0 // pred_check_branch
    %97 = sbr.rel (%p95) target = $region33
  $region32: #{alibi_transformer_forward.15} parent=0 // pred_region
    %v98 = vld [vmem:[#allocation2] sm:$0xff]
    %v99 = vld [vmem:[#allocation2 + $0x8] sm:$0xff]
    %v100 = vld [vmem:[%s2] sm:$0x1]
    %v102 = vperm.slane %v100, 0
    %v104 = vadd.f32 %v98, %v102
    %v105 = vadd.f32 %v99, %v102
    %v106 = vld [vmem:[%s3] sm:$0xff]
    %v107 = vld [vmem:[%s3 + $0x8] sm:$0xff]
    %v108 = vadd.f32 %v104, %v106
    %v109 = vadd.f32 %v105, %v107
    %v110 = vsel %vm92, %v108, 0.0
    %111 = vadd.xlane.f32.xlu0 %v110
    %v112 = vpop.xlane.xlu0 %111
    %v113 = vsel %vm92, %v109, 0.0
    %114 = vadd.xlane.f32.xlu0 %v113
    %v115 = vpop.xlane.xlu0 %114
    %v116 = vrcp.pop 32.0
    %v117 = vmul.f32 32.0, %v116
    %v118 = vsub.f32 1.0, %v117
    %v119 = vmul.f32 %v116, %v118
    %v120 = vadd.f32 %v116, %v119
    %vm121 = vweird.f32 %v116
    %v122 = vsel %vm121, %v116, %v120
    %v123 = vmul.f32 %v112, %v122
    %v124 = vmul.f32 %v115, %v122
    %v125 = vsub.f32 %v108, %v123
    %v126 = vsub.f32 %v109, %v124
    %v127 = vmul.f32 %v125, %v125
    %v128 = vmul.f32 %v126, %v126
    %v129 = vsel %vm92, %v127, 0.0
    %130 = vadd.xlane.f32.xlu0 %v129
    %v131 = vpop.xlane.xlu0 %130
    %v132 = vsel %vm92, %v128, 0.0
    %133 = vadd.xlane.f32.xlu0 %v132
    %v134 = vpop.xlane.xlu0 %133
    %v135 = vmul.f32 %v131, %v122
    %v136 = vmul.f32 %v134, %v122
    %v137 = vadd.f32 %v135, 1e-05
    %v138 = vadd.f32 %v136, 1e-05
    %v139 = vrsqrt.pop %v137
    %v140 = vmul.f32 %v139, %v137
    %v141 = vmul.f32 %v140, %v139
    %v142 = vmul.f32 0.5, %v141
    %v143 = vsub.f32 1.5, %v142
    %v144 = vmul.f32 %v139, %v143
    %vm145 = vweird.f32 %v137
    %vm146 = vweird.f32 %v139
    %vm147 = vmor %vm145, %vm146
    %v148 = vsel %vm147, %v139, %v144
    %v149 = vrsqrt.pop %v138
    %v150 = vmul.f32 %v149, %v138
    %v151 = vmul.f32 %v150, %v149
    %v152 = vmul.f32 0.5, %v151
    %v153 = vsub.f32 1.5, %v152
    %v154 = vmul.f32 %v149, %v153
    %vm155 = vweird.f32 %v138
    %vm156 = vweird.f32 %v149
    %vm157 = vmor %vm155, %vm156
    %v158 = vsel %vm157, %v149, %v154
    %v159 = vmul.f32 %v125, %v148
    %v160 = vmul.f32 %v126, %v158
    %v161 = vld [vmem:[%s4] sm:$0x1]
    %v163 = vperm.slane %v161, 0
    %v165 = vmul.f32 %v159, %v163
    %v166 = vmul.f32 %v160, %v163
    %v167 = vld [vmem:[%s5] sm:$0x1]
    %v169 = vperm.slane %v167, 0
    %v171 = vadd.f32 %v165, %v169
    %v172 = vadd.f32 %v166, %v169
    %173 = vst.msk [vmem:[%s6] sm:$0xff] %vm92, %v171
    %174 = vst.msk [vmem:[%s6 + $0x8] sm:$0xff] %vm92, %v172
  $region33: #{alibi_transformer_forward.15} parent=0 // pred_fallthru
    _
  // Predicated region
  $region34: #{alibi_transformer_forward.15} parent=0 // pred_check
    _
  $region35: #{alibi_transformer_forward.15} parent=0 // pred_check_branch
    %176 = sbr.rel (0) target = $region37
  $region36: #{alibi_transformer_forward.15} parent=0 // pred_region
    _
  $region37: #{alibi_transformer_forward.15} parent=0 // pred_fallthru
    _
  // Predicated region
  $region38: #{alibi_transformer_forward.15} parent=0 // pred_check
    _
  $region39: #{alibi_transformer_forward.15} parent=0 // pred_check_branch
    %178 = sbr.rel (0) target = $region41
  $region40: #{alibi_transformer_forward.15} parent=0 // pred_region
    _
  $region41: #{alibi_transformer_forward.15} parent=0 // pred_fallthru
    _

// kernel: alibi_transformer_forward.21
$region0: #{alibi_transformer_forward.21}
  #allocation0 [shape = 'u32[]', space=smem, size = 0x4, offset = 0x4, fixed_abs, tag = 'smem constant byte address 0x4 - core index']
  #allocation1 [shape = 'u32[72,128]{1,0:T(1,128)}', space=vmem, size = 0x9000, scoped, tag = 'internal scratch']
  #allocation2 [shape = 'f32[16,64]{1,0:T(8,128)}', space=vmem, size = 0x2000, scoped, tag = 'scratch operand']
  %s0 = inlined_call_operand.vmem [shape: f32[16,32], index: 0, kind: input, shape index: {}]
  %s1 = inlined_call_operand.vmem [shape: f32[64,32], index: 1, kind: input, shape index: {}]
  %s2 = inlined_call_operand.vmem [shape: f32[1,32], index: 2, kind: input, shape index: {}]
  %s3 = inlined_call_operand.vmem [shape: f32[1,32], index: 3, kind: input, shape index: {}]
  %s4 = inlined_call_operand.hbm [shape: f32[16,64], index: 4, kind: output, shape index: {}]
  %s5 = sld [smem:[#allocation0]]
  $region34: #{alibi_transformer_forward.21} parent=0
    _
  %s7 = ssub.s32 1, %s5
  %s8 = scalar_select 0, %s7, %s5
  $region1: #{alibi_transformer_forward.21} parent=0
    #allocation3 [shape = 'u8[8192]{0}', space=vmem, size = 0x2000, scoped, tag = 'output window, operand 0, single buffered']
    #allocation4 [shape = 's32[1]{0}', space=sflag, size = 0x4, scoped, tag = 'scoped memory for alibi_transformer_forward.21']
    %9 = vsyncpa [#allocation4], 0
    // Predicated region
    $region2: #{alibi_transformer_forward.21} parent=1 // pred_check
      _
    $region3: #{alibi_transformer_forward.21} parent=1 // pred_check_branch
      %11 = sbr.rel (0) target = $region5
    $region4: #{alibi_transformer_forward.21} parent=1 // pred_region
      _
    $region5: #{alibi_transformer_forward.21} parent=1 // pred_fallthru
      _
    // Predicated region
    $region6: #{alibi_transformer_forward.21} parent=1 // pred_check
      _
    $region7: #{alibi_transformer_forward.21} parent=1 // pred_check_branch
      %13 = sbr.rel (0) target = $region9
    $region8: #{alibi_transformer_forward.21} parent=1 // pred_region
      _
    $region9: #{alibi_transformer_forward.21} parent=1 // pred_fallthru
      _
    // Predicated region
    $region10: #{alibi_transformer_forward.21} parent=1 // pred_check
      _
    $region11: #{alibi_transformer_forward.21} parent=1 // pred_check_branch
      %15 = sbr.rel (0) target = $region13
    $region12: #{alibi_transformer_forward.21} parent=1 // pred_region
      _
    $region13: #{alibi_transformer_forward.21} parent=1 // pred_fallthru
      _
    // Predicated region
    $region14: #{alibi_transformer_forward.21} parent=1 // pred_check
      _
    $region15: #{alibi_transformer_forward.21} parent=1 // pred_check_branch
      %17 = sbr.rel (0) target = $region17
    $region16: #{alibi_transformer_forward.21} parent=1 // pred_region
      _
    $region17: #{alibi_transformer_forward.21} parent=1 // pred_fallthru
      _
    %p19 = scmp.eq.s32.totalorder 0, 0
    // Predicated region
    $region18: #{alibi_transformer_forward.21} parent=1 // pred_check
      %p20 = pneg %p19
    $region19: #{alibi_transformer_forward.21} parent=1 // pred_check_branch
      %22 = sbr.rel (%p20) target = $region21
    $region20: #{alibi_transformer_forward.21} parent=1 // pred_region
      %vm23 = vcmask 523264
      %24 = vst.msk [vmem:[#allocation2] sm:$0xff] %vm23, 0.0
      %25 = vst.msk [vmem:[#allocation2 + $0x8] sm:$0xff] %vm23, 0.0
    $region21: #{alibi_transformer_forward.21} parent=1 // pred_fallthru
      _
    %v26 = vld [vmem:[%s0] sm:$0xff]
    %v27 = vld [vmem:[%s0 + $0x8] sm:$0xff]
    %vm28 = vcmask 261120
    %v29 = vsel %vm28, %v26, 0.0
    %30 = vadd.xlane.f32.xlu0 %v29
    %v31 = vpop.xlane.xlu0 %30
    %v32 = vsel %vm28, %v27, 0.0
    %33 = vadd.xlane.f32.xlu0 %v32
    %v34 = vpop.xlane.xlu0 %33
    %v35 = vrcp.pop 32.0
    %v36 = vmul.f32 32.0, %v35
    %v37 = vsub.f32 1.0, %v36
    %v38 = vmul.f32 %v35, %v37
    %v39 = vadd.f32 %v35, %v38
    %vm40 = vweird.f32 %v35
    %v41 = vsel %vm40, %v35, %v39
    %v42 = vmul.f32 %v31, %v41
    %v43 = vmul.f32 %v34, %v41
    %v44 = vsub.f32 %v26, %v42
    %v45 = vsub.f32 %v27, %v43
    %v46 = vmul.f32 %v44, %v44
    %v47 = vmul.f32 %v45, %v45
    %v48 = vsel %vm28, %v46, 0.0
    %49 = vadd.xlane.f32.xlu0 %v48
    %v50 = vpop.xlane.xlu0 %49
    %v51 = vsel %vm28, %v47, 0.0
    %52 = vadd.xlane.f32.xlu0 %v51
    %v53 = vpop.xlane.xlu0 %52
    %v54 = vmul.f32 %v50, %v41
    %v55 = vmul.f32 %v53, %v41
    %v56 = vadd.f32 %v54, 1e-05
    %v57 = vadd.f32 %v55, 1e-05
    %v58 = vrsqrt.pop %v56
    %v59 = vmul.f32 %v58, %v56
    %v60 = vmul.f32 %v59, %v58
    %v61 = vmul.f32 0.5, %v60
    %v62 = vsub.f32 1.5, %v61
    %v63 = vmul.f32 %v58, %v62
    %vm64 = vweird.f32 %v56
    %vm65 = vweird.f32 %v58
    %vm66 = vmor %vm64, %vm65
    %v67 = vsel %vm66, %v58, %v63
    %v68 = vrsqrt.pop %v57
    %v69 = vmul.f32 %v68, %v57
    %v70 = vmul.f32 %v69, %v68
    %v71 = vmul.f32 0.5, %v70
    %v72 = vsub.f32 1.5, %v71
    %v73 = vmul.f32 %v68, %v72
    %vm74 = vweird.f32 %v57
    %vm75 = vweird.f32 %v68
    %vm76 = vmor %vm74, %vm75
    %v77 = vsel %vm76, %v68, %v73
    %v78 = vmul.f32 %v44, %v67
    %v79 = vmul.f32 %v45, %v77
    %v80 = vld [vmem:[%s2] sm:$0x1]
    %v82 = vperm.slane %v80, 0
    %v84 = vmul.f32 %v78, %v82
    %v85 = vmul.f32 %v79, %v82
    %v86 = vld [vmem:[%s3] sm:$0x1]
    %v88 = vperm.slane %v86, 0
    %v90 = vadd.f32 %v84, %v88
    %v91 = vadd.f32 %v85, %v88
    %v92 = vpack.c.bf16 %v91, %v90
    %v93 = vld [vmem:[%s1] sm:$0xff]
    %v94 = vld [vmem:[%s1 + $0x8] sm:$0xff]
    %v95 = vld [vmem:[%s1 + $0x10] sm:$0xff]
    %v96 = vld [vmem:[%s1 + $0x18] sm:$0xff]
    %v97 = vld [vmem:[%s1 + $0x20] sm:$0xff]
    %v98 = vld [vmem:[%s1 + $0x28] sm:$0xff]
    %v99 = vld [vmem:[%s1 + $0x30] sm:$0xff]
    %v100 = vld [vmem:[%s1 + $0x38] sm:$0xff]
    %v101 = vpack.c.bf16 %v94, %v93
    %v102 = vpack.c.bf16 %v96, %v95
    %v103 = vpack.c.bf16 %v98, %v97
    %v104 = vpack.c.bf16 %v100, %v99
    %v105 = vld [vmem:[#allocation2] sm:$0xff]
    %v106 = vld [vmem:[#allocation2 + $0x8] sm:$0xff]
    %v108 = vsel %vm28, %v92, 0
    %v111 = vsel %vm28, %v101, 0
    %v114 = vsel %vm28, %v102, 0
    %v117 = vsel %vm28, %v103, 0
    %v120 = vsel %vm28, %v104, 0
    %122 = vmatpush.bf16.xpose.msra.mxu0 0
    %123 = vmatpush.bf16.xpose.msra.mxu0 0
    %124 = vmatpush.bf16.xpose.msra.mxu0 0
    %125 = vmatpush.bf16.xpose.msra.mxu0 0
    %126 = vmatpush.bf16.xpose.msra.mxu0 %v120
    %127 = vmatpush.bf16.xpose.msra.mxu0 %v117
    %128 = vmatpush.bf16.xpose.msra.mxu0 %v114
    %129 = vmatpush.bf16.xpose.msra.mxu0 %v111
    %130 = vmatmul.bf16.gmra.mxu0 %v108
    %v131 = vpop.f32.mrf.mxu0
    %v132 = vadd.f32 0.0, %v131
    %v133 = vpop.f32.mrf.mxu0
    %v134 = vadd.f32 0.0, %v133
    %135 = vdwg.mxu0
    %v136 = vadd.f32 %v105, %v132
    %v137 = vadd.f32 %v106, %v134
    %vm138 = vcmask 523264
    %139 = vst.msk [vmem:[#allocation2] sm:$0xff] %vm138, %v136
    %140 = vst.msk [vmem:[#allocation2 + $0x8] sm:$0xff] %vm138, %v137
    // Predicated region
    $region22: #{alibi_transformer_forward.21} parent=1 // pred_check
      %p141 = pneg %p19
    $region23: #{alibi_transformer_forward.21} parent=1 // pred_check_branch
      %143 = sbr.rel (%p141) target = $region25
    $region24: #{alibi_transformer_forward.21} parent=1 // pred_region
      %v144 = vld [vmem:[#allocation2] sm:$0xff]
      %v145 = vld [vmem:[#allocation2 + $0x8] sm:$0xff]
      %146 = vst.msk [vmem:[#allocation3] sm:$0xff] %vm138, %v144
      %147 = vst.msk [vmem:[#allocation3 + $0x8] sm:$0xff] %vm138, %v145
    $region25: #{alibi_transformer_forward.21} parent=1 // pred_fallthru
      _
    // Predicated region
    $region26: #{alibi_transformer_forward.21} parent=1 // pred_check
      _
    $region27: #{alibi_transformer_forward.21} parent=1 // pred_check_branch
      %149 = sbr.rel (0) target = $region29
    $region28: #{alibi_transformer_forward.21} parent=1 // pred_region
      %151 = vsyncadd [#allocation4], 0
      %s152 = sshll.u32 [#allocation3], 4
      %s153 = int_to_ptr.vmem [resolvable:$true] %s152
      %s154 = sshll.u32 %s4, 4
      %s155 = int_to_ptr.hbm [resolvable:$true] %s154
      %160 = dma.vmem_to_hbm [thread:$0]  %s153, 256, %s155, [#allocation4], 128, 128, 8
    $region29: #{alibi_transformer_forward.21} parent=1 // pred_fallthru
      _
    // Predicated region
    $region30: #{alibi_transformer_forward.21} parent=1 // pred_check
      _
    $region31: #{alibi_transformer_forward.21} parent=1 // pred_check_branch
      %162 = sbr.rel (0) target = $region33
    $region32: #{alibi_transformer_forward.21} parent=1 // pred_region
      %164 = dma.done [#allocation4], 256
    $region33: #{alibi_transformer_forward.21} parent=1 // pred_fallthru
      _
    %165 = vsyncpa [#allocation4], 1

</llo_original>
